<compile_context>
chip_gen: v6e
topology: v6e:2x2x1
jax: 0.10.0
libtpu: 0.0.40
codegen_flags: <defaults>
</compile_context>

<pallas_src>
import jax
import jax.numpy as jnp
from jax.experimental import pallas as pl
from jax.experimental.pallas import tpu as pltpu


def _round_up(n, m):
    return ((n + m - 1) // m) * m


# ---------------------------------------------------------------------------
# Pallas kernel factory: full LSTM recurrence + final Linear on h_T.
# ---------------------------------------------------------------------------
def _make_lstm_kernel(T, I, Hp, G, Op):
    """Kernel closed over static geometry.

    Single fused slab input (one DMA), row layout:
      rows [0, Hp)      cols [0, G)    : W_hh packed (Hp, 4*Hp), gates [i|f|g|o]
      rows [0, Hp)      cols [G, G+Op) : W_lin packed (Hp, Op)
      rows [Hp, Hp+I)   cols [0, G)    : W_ih packed (I, 4*Hp)
      row  Hp+I         cols [0, G)    : b_ih + b_hh          (cols G:G+Op : b_lin)
      row  Hp+I+1       cols [0, G)    : activation post-mul  [0.5|0.5|1|0.5]
      row  Hp+I+2       cols [0, G)    : activation post-add  [0.5|0.5|0|0.5]
      rows [Hp+I+3, +T) cols [0, I)    : input sequence x (T, I)
    i/f/o weight/bias columns are pre-scaled by 0.5 in the wrapper so that
    sigmoid(z) = 0.5*tanh(z/2)+0.5 needs only the post-FMA above.
    """
    wih_r = Hp
    b_r = Hp + I
    pm_r = Hp + I + 1
    pa_r = Hp + I + 2
    x_r = Hp + I + 3

    def kernel(slab_ref, out_ref):
        whh_view = slab_ref.at[0:Hp, 0:G]                # ref view; read per step
        bias = slab_ref[b_r:b_r + 1, 0:G]                # (1, G)
        post_mul = slab_ref[pm_r:pm_r + 1, 0:G]          # (1, G)
        post_add = slab_ref[pa_r:pa_r + 1, 0:G]          # (1, G)

        # Whole-sequence input projection, hoisted off the serial chain.
        if I == 1:
            # K == 1: outer product -> VPU broadcast multiply, no MXU pass.
            xw = (slab_ref[x_r:x_r + T, 0:1]
                  * slab_ref[wih_r:wih_r + 1, 0:G] + bias)           # (T, G)
        else:
            xw = (jnp.dot(slab_ref[x_r:x_r + T, 0:I],
                          slab_ref[wih_r:wih_r + I, 0:G],
                          preferred_element_type=jnp.float32) + bias)

        h = jnp.zeros((1, Hp), jnp.float32)
        c = jnp.zeros((1, Hp), jnp.float32)

        # T is static and tiny -> fully unrolled; h/c live in vregs only.
        for t in range(T):
            pre = xw[t:t + 1, :] + jnp.dot(h, whh_view[...],
                                           preferred_element_type=jnp.float32)
            # One fused tanh over all four gate blocks + one FMA:
            #   i,f,o = sigmoid(z) = 0.5*tanh(z/2)+0.5  (z/2 folded into weights)
            #   g     = tanh(z)
            act = jnp.tanh(pre) * post_mul + post_add               # (1, G)
            i_g = act[:, 0 * Hp:1 * Hp]
            f_g = act[:, 1 * Hp:2 * Hp]
            g_g = act[:, 2 * Hp:3 * Hp]
            o_g = act[:, 3 * Hp:4 * Hp]
            c = f_g * c + i_g * g_g
            h = o_g * jnp.tanh(c)

        # predictions[-1] == linear(h_T); lane-dense (1, Op) output.
        out_ref[...] = (jnp.dot(h, slab_ref[0:Hp, G:G + Op],
                                preferred_element_type=jnp.float32)
                        + slab_ref[b_r:b_r + 1, G:G + Op])

    return kernel


# ---------------------------------------------------------------------------
# Wrapper
# ---------------------------------------------------------------------------
def lstm_forward(input_seq, w_ih, w_hh, b_ih, b_hh, w_lin, b_lin, hidden_size):
    """Mirrors LSTM.forward: returns predictions[-1], shape (output_size,)."""
    T = input_seq.shape[0]
    x = jnp.asarray(input_seq, jnp.float32).reshape(T, -1)          # (T, I)
    I = x.shape[-1]
    H = hidden_size
    Hp = _round_up(H, 128)                                          # lane-align gates
    G = 4 * Hp
    O = w_lin.shape[0]
    Op = _round_up(O, 128)                                          # lane-dense out

    w_ih = jnp.asarray(w_ih, jnp.float32)                           # (4H, I)
    w_hh = jnp.asarray(w_hh, jnp.float32)                           # (4H, H)
    b = jnp.asarray(b_ih, jnp.float32) + jnp.asarray(b_hh, jnp.float32)  # (4H,)
    w_lin = jnp.asarray(w_lin, jnp.float32)                         # (O, H)
    b_lin = jnp.asarray(b_lin, jnp.float32)                         # (O,)

    # Single fused slab (one DMA).  Each gate (i,f,g,o) gets its own Hp-wide,
    # 128-lane-aligned block; padded rows/cols/lanes are zero, so padded h/c
    # lanes provably stay zero through the recurrence.  The i/f/o blocks are
    # pre-scaled by 0.5 (exact) for the sigmoid-via-tanh identity.
    rows = Hp + I + 3 + T
    cols = G + Op
    slab = jnp.zeros((rows, cols), jnp.float32)
    for k, (scale, pm, pa) in enumerate(((0.5, 0.5, 0.5),   # i
                                         (0.5, 0.5, 0.5),   # f
                                         (1.0, 1.0, 0.0),   # g
                                         (0.5, 0.5, 0.5))):  # o
        slab = slab.at[0:H, k * Hp:k * Hp + H].set(scale * w_hh[k * H:(k + 1) * H, :].T)
        slab = slab.at[Hp:Hp + I, k * Hp:k * Hp + H].set(scale * w_ih[k * H:(k + 1) * H, :].T)
        slab = slab.at[Hp + I, k * Hp:k * Hp + H].set(scale * b[k * H:(k + 1) * H])
        slab = slab.at[Hp + I + 1, k * Hp:(k + 1) * Hp].set(pm)     # post-mul
        slab = slab.at[Hp + I + 2, k * Hp:(k + 1) * Hp].set(pa)     # post-add
    slab = slab.at[0:H, G:G + O].set(w_lin.T)                       # W_lin
    slab = slab.at[Hp + I, G:G + O].set(b_lin)                      # b_lin
    slab = slab.at[Hp + I + 3:Hp + I + 3 + T, 0:I].set(x)           # x

    kernel = _make_lstm_kernel(T, I, Hp, G, Op)
    out = pl.pallas_call(
        kernel,
        out_shape=jax.ShapeDtypeStruct((1, Op), jnp.float32),
        in_specs=[pl.BlockSpec(memory_space=pltpu.MemorySpace.VMEM)],
        out_specs=pl.BlockSpec(memory_space=pltpu.MemorySpace.VMEM),
    )(slab)
    return out[0, :O]                                               # (O,)


# ---------------------------------------------------------------------------
# Pure-JAX reference (silent correctness check)
# ---------------------------------------------------------------------------
def lstm_reference(input_seq, w_ih, w_hh, b_ih, b_hh, w_lin, b_lin,
                   hidden_size):
    T = input_seq.shape[0]
    x = jnp.asarray(input_seq, jnp.float32).reshape(T, 1, -1)
    H = hidden_size
    h = jnp.zeros((1, H), jnp.float32)
    c = jnp.zeros((1, H), jnp.float32)
    for t in range(T):
        gates = x[t] @ w_ih.T + h @ w_hh.T + b_ih + b_hh
        i_g = jax.nn.sigmoid(gates[:, 0:H])
        f_g = jax.nn.sigmoid(gates[:, H:2 * H])
        g_g = jnp.tanh(gates[:, 2 * H:3 * H])
        o_g = jax.nn.sigmoid(gates[:, 3 * H:4 * H])
        c = f_g * c + i_g * g_g
        h = o_g * jnp.tanh(c)
    pred = h @ w_lin.T + b_lin
    return pred[0]


if __name__ == "__main__":
    # Module defaults: input_size=1, hidden_layer_size=50, output_size=1
    input_size, hidden_size, output_size = 1, 50, 1
    seq_len = 8

    key = jax.random.PRNGKey(0)
    k = jax.random.split(key, 8)
    s = 1.0 / jnp.sqrt(hidden_size)   # PyTorch-style uniform(-1/sqrt(H), 1/sqrt(H))

    w_ih = jax.random.uniform(k[0], (4 * hidden_size, input_size),
                              jnp.float32, -s, s)
    w_hh = jax.random.uniform(k[1], (4 * hidden_size, hidden_size),
                              jnp.float32, -s, s)
    b_ih = jax.random.uniform(k[2], (4 * hidden_size,), jnp.float32, -s, s)
    b_hh = jax.random.uniform(k[3], (4 * hidden_size,), jnp.float32, -s, s)
    w_lin = jax.random.uniform(k[4], (output_size, hidden_size),
                               jnp.float32, -s, s)
    b_lin = jax.random.uniform(k[5], (output_size,), jnp.float32, -s, s)

    input_seq = jax.random.normal(k[6], (seq_len,), jnp.float32)

    pred = lstm_forward(input_seq, w_ih, w_hh, b_ih, b_hh, w_lin, b_lin,
                        hidden_size)
    pred = jax.block_until_ready(pred)

    ref = lstm_reference(input_seq, w_ih, w_hh, b_ih, b_hh, w_lin, b_lin,
                         hidden_size)
    assert pred.shape == (output_size,)
    assert jnp.allclose(pred, ref, atol=1e-5, rtol=1e-5)

    print("KERNEL_OK")
</pallas_src>

<mosaic_0001>
module attributes {stable_mosaic.version = 11 : i64} {
  func.func @kernel(%arg0: memref<140x640xf32, #tpu.memory_space<vmem>>, %arg1: memref<1x128xf32, #tpu.memory_space<vmem>>) attributes {dimension_semantics = [], scalar_prefetch = 0 : i64, scratch_operands = 0 : i64, tpu.core_type = #tpu.core_type<tc>} {
    %c129 = arith.constant 129 : index
    %c0 = arith.constant 0 : index
    %0 = vector.load %arg0[%c129, %c0] : memref<140x640xf32, #tpu.memory_space<vmem>>, vector<1x512xf32>
    %c130 = arith.constant 130 : index
    %c0_0 = arith.constant 0 : index
    %1 = vector.load %arg0[%c130, %c0_0] : memref<140x640xf32, #tpu.memory_space<vmem>>, vector<1x512xf32>
    %c131 = arith.constant 131 : index
    %c0_1 = arith.constant 0 : index
    %2 = vector.load %arg0[%c131, %c0_1] : memref<140x640xf32, #tpu.memory_space<vmem>>, vector<1x512xf32>
    %c132 = arith.constant 132 : index
    %c0_2 = arith.constant 0 : index
    %3 = vector.load %arg0[%c132, %c0_2] : memref<140x640xf32, #tpu.memory_space<vmem>>, vector<8x1xf32>
    %c128 = arith.constant 128 : index
    %c0_3 = arith.constant 0 : index
    %4 = vector.load %arg0[%c128, %c0_3] : memref<140x640xf32, #tpu.memory_space<vmem>>, vector<1x512xf32>
    %5 = vector.broadcast %3 : vector<8x1xf32> to vector<8x512xf32>
    %6 = vector.broadcast %4 : vector<1x512xf32> to vector<8x512xf32>
    %7 = arith.mulf %5, %6 : vector<8x512xf32>
    %8 = vector.broadcast %0 : vector<1x512xf32> to vector<8x512xf32>
    %9 = arith.addf %7, %8 : vector<8x512xf32>
    %cst = arith.constant 0.000000e+00 : f32
    %10 = vector.broadcast %cst : f32 to vector<1x128xf32>
    %cst_4 = arith.constant 0.000000e+00 : f32
    %11 = vector.broadcast %cst_4 : f32 to vector<1x128xf32>
    %12 = vector.extract_strided_slice %9 {offsets = [0, 0], sizes = [1, 512], strides = [1, 1]} : vector<8x512xf32> to vector<1x512xf32>
    %c0_5 = arith.constant 0 : index
    %c0_6 = arith.constant 0 : index
    %13 = vector.load %arg0[%c0_5, %c0_6] : memref<140x640xf32, #tpu.memory_space<vmem>>, vector<128x512xf32>
    %cst_7 = arith.constant dense<0.000000e+00> : vector<1x512xf32>
    %14 = tpu.matmul %10, %13, %cst_7 {dimension_numbers = #tpu.dot_dimension_numbers<[1], [0], [0], [1], [0, 0, 1, 1], [], []>} : vector<1x128xf32>, vector<128x512xf32>, vector<1x512xf32> -> vector<1x512xf32>
    %15 = arith.addf %12, %14 : vector<1x512xf32>
    %16 = math.tanh %15 : vector<1x512xf32>
    %17 = arith.mulf %16, %1 : vector<1x512xf32>
    %18 = arith.addf %17, %2 : vector<1x512xf32>
    %19 = vector.extract_strided_slice %18 {offsets = [0, 0], sizes = [1, 128], strides = [1, 1]} : vector<1x512xf32> to vector<1x128xf32>
    %20 = vector.extract_strided_slice %18 {offsets = [0, 128], sizes = [1, 128], strides = [1, 1]} : vector<1x512xf32> to vector<1x128xf32>
    %21 = vector.extract_strided_slice %18 {offsets = [0, 256], sizes = [1, 128], strides = [1, 1]} : vector<1x512xf32> to vector<1x128xf32>
    %22 = vector.extract_strided_slice %18 {offsets = [0, 384], sizes = [1, 128], strides = [1, 1]} : vector<1x512xf32> to vector<1x128xf32>
    %23 = arith.mulf %20, %11 : vector<1x128xf32>
    %24 = arith.mulf %19, %21 : vector<1x128xf32>
    %25 = arith.addf %23, %24 : vector<1x128xf32>
    %26 = math.tanh %25 : vector<1x128xf32>
    %27 = arith.mulf %22, %26 : vector<1x128xf32>
    %28 = vector.extract_strided_slice %9 {offsets = [1, 0], sizes = [1, 512], strides = [1, 1]} : vector<8x512xf32> to vector<1x512xf32>
    %c0_8 = arith.constant 0 : index
    %c0_9 = arith.constant 0 : index
    %29 = vector.load %arg0[%c0_8, %c0_9] : memref<140x640xf32, #tpu.memory_space<vmem>>, vector<128x512xf32>
    %cst_10 = arith.constant dense<0.000000e+00> : vector<1x512xf32>
    %30 = tpu.matmul %27, %29, %cst_10 {dimension_numbers = #tpu.dot_dimension_numbers<[1], [0], [0], [1], [0, 0, 1, 1], [], []>} : vector<1x128xf32>, vector<128x512xf32>, vector<1x512xf32> -> vector<1x512xf32>
    %31 = arith.addf %28, %30 : vector<1x512xf32>
    %32 = math.tanh %31 : vector<1x512xf32>
    %33 = arith.mulf %32, %1 : vector<1x512xf32>
    %34 = arith.addf %33, %2 : vector<1x512xf32>
    %35 = vector.extract_strided_slice %34 {offsets = [0, 0], sizes = [1, 128], strides = [1, 1]} : vector<1x512xf32> to vector<1x128xf32>
    %36 = vector.extract_strided_slice %34 {offsets = [0, 128], sizes = [1, 128], strides = [1, 1]} : vector<1x512xf32> to vector<1x128xf32>
    %37 = vector.extract_strided_slice %34 {offsets = [0, 256], sizes = [1, 128], strides = [1, 1]} : vector<1x512xf32> to vector<1x128xf32>
    %38 = vector.extract_strided_slice %34 {offsets = [0, 384], sizes = [1, 128], strides = [1, 1]} : vector<1x512xf32> to vector<1x128xf32>
    %39 = arith.mulf %36, %25 : vector<1x128xf32>
    %40 = arith.mulf %35, %37 : vector<1x128xf32>
    %41 = arith.addf %39, %40 : vector<1x128xf32>
    %42 = math.tanh %41 : vector<1x128xf32>
    %43 = arith.mulf %38, %42 : vector<1x128xf32>
    %44 = vector.extract_strided_slice %9 {offsets = [2, 0], sizes = [1, 512], strides = [1, 1]} : vector<8x512xf32> to vector<1x512xf32>
    %c0_11 = arith.constant 0 : index
    %c0_12 = arith.constant 0 : index
    %45 = vector.load %arg0[%c0_11, %c0_12] : memref<140x640xf32, #tpu.memory_space<vmem>>, vector<128x512xf32>
    %cst_13 = arith.constant dense<0.000000e+00> : vector<1x512xf32>
    %46 = tpu.matmul %43, %45, %cst_13 {dimension_numbers = #tpu.dot_dimension_numbers<[1], [0], [0], [1], [0, 0, 1, 1], [], []>} : vector<1x128xf32>, vector<128x512xf32>, vector<1x512xf32> -> vector<1x512xf32>
    %47 = arith.addf %44, %46 : vector<1x512xf32>
    %48 = math.tanh %47 : vector<1x512xf32>
    %49 = arith.mulf %48, %1 : vector<1x512xf32>
    %50 = arith.addf %49, %2 : vector<1x512xf32>
    %51 = vector.extract_strided_slice %50 {offsets = [0, 0], sizes = [1, 128], strides = [1, 1]} : vector<1x512xf32> to vector<1x128xf32>
    %52 = vector.extract_strided_slice %50 {offsets = [0, 128], sizes = [1, 128], strides = [1, 1]} : vector<1x512xf32> to vector<1x128xf32>
    %53 = vector.extract_strided_slice %50 {offsets = [0, 256], sizes = [1, 128], strides = [1, 1]} : vector<1x512xf32> to vector<1x128xf32>
    %54 = vector.extract_strided_slice %50 {offsets = [0, 384], sizes = [1, 128], strides = [1, 1]} : vector<1x512xf32> to vector<1x128xf32>
    %55 = arith.mulf %52, %41 : vector<1x128xf32>
    %56 = arith.mulf %51, %53 : vector<1x128xf32>
    %57 = arith.addf %55, %56 : vector<1x128xf32>
    %58 = math.tanh %57 : vector<1x128xf32>
    %59 = arith.mulf %54, %58 : vector<1x128xf32>
    %60 = vector.extract_strided_slice %9 {offsets = [3, 0], sizes = [1, 512], strides = [1, 1]} : vector<8x512xf32> to vector<1x512xf32>
    %c0_14 = arith.constant 0 : index
    %c0_15 = arith.constant 0 : index
    %61 = vector.load %arg0[%c0_14, %c0_15] : memref<140x640xf32, #tpu.memory_space<vmem>>, vector<128x512xf32>
    %cst_16 = arith.constant dense<0.000000e+00> : vector<1x512xf32>
    %62 = tpu.matmul %59, %61, %cst_16 {dimension_numbers = #tpu.dot_dimension_numbers<[1], [0], [0], [1], [0, 0, 1, 1], [], []>} : vector<1x128xf32>, vector<128x512xf32>, vector<1x512xf32> -> vector<1x512xf32>
    %63 = arith.addf %60, %62 : vector<1x512xf32>
    %64 = math.tanh %63 : vector<1x512xf32>
    %65 = arith.mulf %64, %1 : vector<1x512xf32>
    %66 = arith.addf %65, %2 : vector<1x512xf32>
    %67 = vector.extract_strided_slice %66 {offsets = [0, 0], sizes = [1, 128], strides = [1, 1]} : vector<1x512xf32> to vector<1x128xf32>
    %68 = vector.extract_strided_slice %66 {offsets = [0, 128], sizes = [1, 128], strides = [1, 1]} : vector<1x512xf32> to vector<1x128xf32>
    %69 = vector.extract_strided_slice %66 {offsets = [0, 256], sizes = [1, 128], strides = [1, 1]} : vector<1x512xf32> to vector<1x128xf32>
    %70 = vector.extract_strided_slice %66 {offsets = [0, 384], sizes = [1, 128], strides = [1, 1]} : vector<1x512xf32> to vector<1x128xf32>
    %71 = arith.mulf %68, %57 : vector<1x128xf32>
    %72 = arith.mulf %67, %69 : vector<1x128xf32>
    %73 = arith.addf %71, %72 : vector<1x128xf32>
    %74 = math.tanh %73 : vector<1x128xf32>
    %75 = arith.mulf %70, %74 : vector<1x128xf32>
    %76 = vector.extract_strided_slice %9 {offsets = [4, 0], sizes = [1, 512], strides = [1, 1]} : vector<8x512xf32> to vector<1x512xf32>
    %c0_17 = arith.constant 0 : index
    %c0_18 = arith.constant 0 : index
    %77 = vector.load %arg0[%c0_17, %c0_18] : memref<140x640xf32, #tpu.memory_space<vmem>>, vector<128x512xf32>
    %cst_19 = arith.constant dense<0.000000e+00> : vector<1x512xf32>
    %78 = tpu.matmul %75, %77, %cst_19 {dimension_numbers = #tpu.dot_dimension_numbers<[1], [0], [0], [1], [0, 0, 1, 1], [], []>} : vector<1x128xf32>, vector<128x512xf32>, vector<1x512xf32> -> vector<1x512xf32>
    %79 = arith.addf %76, %78 : vector<1x512xf32>
    %80 = math.tanh %79 : vector<1x512xf32>
    %81 = arith.mulf %80, %1 : vector<1x512xf32>
    %82 = arith.addf %81, %2 : vector<1x512xf32>
    %83 = vector.extract_strided_slice %82 {offsets = [0, 0], sizes = [1, 128], strides = [1, 1]} : vector<1x512xf32> to vector<1x128xf32>
    %84 = vector.extract_strided_slice %82 {offsets = [0, 128], sizes = [1, 128], strides = [1, 1]} : vector<1x512xf32> to vector<1x128xf32>
    %85 = vector.extract_strided_slice %82 {offsets = [0, 256], sizes = [1, 128], strides = [1, 1]} : vector<1x512xf32> to vector<1x128xf32>
    %86 = vector.extract_strided_slice %82 {offsets = [0, 384], sizes = [1, 128], strides = [1, 1]} : vector<1x512xf32> to vector<1x128xf32>
    %87 = arith.mulf %84, %73 : vector<1x128xf32>
    %88 = arith.mulf %83, %85 : vector<1x128xf32>
    %89 = arith.addf %87, %88 : vector<1x128xf32>
    %90 = math.tanh %89 : vector<1x128xf32>
    %91 = arith.mulf %86, %90 : vector<1x128xf32>
    %92 = vector.extract_strided_slice %9 {offsets = [5, 0], sizes = [1, 512], strides = [1, 1]} : vector<8x512xf32> to vector<1x512xf32>
    %c0_20 = arith.constant 0 : index
    %c0_21 = arith.constant 0 : index
    %93 = vector.load %arg0[%c0_20, %c0_21] : memref<140x640xf32, #tpu.memory_space<vmem>>, vector<128x512xf32>
    %cst_22 = arith.constant dense<0.000000e+00> : vector<1x512xf32>
    %94 = tpu.matmul %91, %93, %cst_22 {dimension_numbers = #tpu.dot_dimension_numbers<[1], [0], [0], [1], [0, 0, 1, 1], [], []>} : vector<1x128xf32>, vector<128x512xf32>, vector<1x512xf32> -> vector<1x512xf32>
    %95 = arith.addf %92, %94 : vector<1x512xf32>
    %96 = math.tanh %95 : vector<1x512xf32>
    %97 = arith.mulf %96, %1 : vector<1x512xf32>
    %98 = arith.addf %97, %2 : vector<1x512xf32>
    %99 = vector.extract_strided_slice %98 {offsets = [0, 0], sizes = [1, 128], strides = [1, 1]} : vector<1x512xf32> to vector<1x128xf32>
    %100 = vector.extract_strided_slice %98 {offsets = [0, 128], sizes = [1, 128], strides = [1, 1]} : vector<1x512xf32> to vector<1x128xf32>
    %101 = vector.extract_strided_slice %98 {offsets = [0, 256], sizes = [1, 128], strides = [1, 1]} : vector<1x512xf32> to vector<1x128xf32>
    %102 = vector.extract_strided_slice %98 {offsets = [0, 384], sizes = [1, 128], strides = [1, 1]} : vector<1x512xf32> to vector<1x128xf32>
    %103 = arith.mulf %100, %89 : vector<1x128xf32>
    %104 = arith.mulf %99, %101 : vector<1x128xf32>
    %105 = arith.addf %103, %104 : vector<1x128xf32>
    %106 = math.tanh %105 : vector<1x128xf32>
    %107 = arith.mulf %102, %106 : vector<1x128xf32>
    %108 = vector.extract_strided_slice %9 {offsets = [6, 0], sizes = [1, 512], strides = [1, 1]} : vector<8x512xf32> to vector<1x512xf32>
    %c0_23 = arith.constant 0 : index
    %c0_24 = arith.constant 0 : index
    %109 = vector.load %arg0[%c0_23, %c0_24] : memref<140x640xf32, #tpu.memory_space<vmem>>, vector<128x512xf32>
    %cst_25 = arith.constant dense<0.000000e+00> : vector<1x512xf32>
    %110 = tpu.matmul %107, %109, %cst_25 {dimension_numbers = #tpu.dot_dimension_numbers<[1], [0], [0], [1], [0, 0, 1, 1], [], []>} : vector<1x128xf32>, vector<128x512xf32>, vector<1x512xf32> -> vector<1x512xf32>
    %111 = arith.addf %108, %110 : vector<1x512xf32>
    %112 = math.tanh %111 : vector<1x512xf32>
    %113 = arith.mulf %112, %1 : vector<1x512xf32>
    %114 = arith.addf %113, %2 : vector<1x512xf32>
    %115 = vector.extract_strided_slice %114 {offsets = [0, 0], sizes = [1, 128], strides = [1, 1]} : vector<1x512xf32> to vector<1x128xf32>
    %116 = vector.extract_strided_slice %114 {offsets = [0, 128], sizes = [1, 128], strides = [1, 1]} : vector<1x512xf32> to vector<1x128xf32>
    %117 = vector.extract_strided_slice %114 {offsets = [0, 256], sizes = [1, 128], strides = [1, 1]} : vector<1x512xf32> to vector<1x128xf32>
    %118 = vector.extract_strided_slice %114 {offsets = [0, 384], sizes = [1, 128], strides = [1, 1]} : vector<1x512xf32> to vector<1x128xf32>
    %119 = arith.mulf %116, %105 : vector<1x128xf32>
    %120 = arith.mulf %115, %117 : vector<1x128xf32>
    %121 = arith.addf %119, %120 : vector<1x128xf32>
    %122 = math.tanh %121 : vector<1x128xf32>
    %123 = arith.mulf %118, %122 : vector<1x128xf32>
    %124 = vector.extract_strided_slice %9 {offsets = [7, 0], sizes = [1, 512], strides = [1, 1]} : vector<8x512xf32> to vector<1x512xf32>
    %c0_26 = arith.constant 0 : index
    %c0_27 = arith.constant 0 : index
    %125 = vector.load %arg0[%c0_26, %c0_27] : memref<140x640xf32, #tpu.memory_space<vmem>>, vector<128x512xf32>
    %cst_28 = arith.constant dense<0.000000e+00> : vector<1x512xf32>
    %126 = tpu.matmul %123, %125, %cst_28 {dimension_numbers = #tpu.dot_dimension_numbers<[1], [0], [0], [1], [0, 0, 1, 1], [], []>} : vector<1x128xf32>, vector<128x512xf32>, vector<1x512xf32> -> vector<1x512xf32>
    %127 = arith.addf %124, %126 : vector<1x512xf32>
    %128 = math.tanh %127 : vector<1x512xf32>
    %129 = arith.mulf %128, %1 : vector<1x512xf32>
    %130 = arith.addf %129, %2 : vector<1x512xf32>
    %131 = vector.extract_strided_slice %130 {offsets = [0, 0], sizes = [1, 128], strides = [1, 1]} : vector<1x512xf32> to vector<1x128xf32>
    %132 = vector.extract_strided_slice %130 {offsets = [0, 128], sizes = [1, 128], strides = [1, 1]} : vector<1x512xf32> to vector<1x128xf32>
    %133 = vector.extract_strided_slice %130 {offsets = [0, 256], sizes = [1, 128], strides = [1, 1]} : vector<1x512xf32> to vector<1x128xf32>
    %134 = vector.extract_strided_slice %130 {offsets = [0, 384], sizes = [1, 128], strides = [1, 1]} : vector<1x512xf32> to vector<1x128xf32>
    %135 = arith.mulf %132, %121 : vector<1x128xf32>
    %136 = arith.mulf %131, %133 : vector<1x128xf32>
    %137 = arith.addf %135, %136 : vector<1x128xf32>
    %138 = math.tanh %137 : vector<1x128xf32>
    %139 = arith.mulf %134, %138 : vector<1x128xf32>
    %c0_29 = arith.constant 0 : index
    %c512 = arith.constant 512 : index
    %140 = vector.load %arg0[%c0_29, %c512] : memref<140x640xf32, #tpu.memory_space<vmem>>, vector<128x128xf32>
    %cst_30 = arith.constant dense<0.000000e+00> : vector<1x128xf32>
    %141 = tpu.matmul %139, %140, %cst_30 {dimension_numbers = #tpu.dot_dimension_numbers<[1], [0], [0], [1], [0, 0, 1, 1], [], []>} : vector<1x128xf32>, vector<128x128xf32>, vector<1x128xf32> -> vector<1x128xf32>
    %c129_31 = arith.constant 129 : index
    %c512_32 = arith.constant 512 : index
    %142 = vector.load %arg0[%c129_31, %c512_32] : memref<140x640xf32, #tpu.memory_space<vmem>>, vector<1x128xf32>
    %143 = arith.addf %141, %142 : vector<1x128xf32>
    %c0_33 = arith.constant 0 : index
    %c0_34 = arith.constant 0 : index
    %144 = vector.load %arg1[%c0_33, %c0_34] : memref<1x128xf32, #tpu.memory_space<vmem>>, vector<1x128xf32>
    tpu.vector_store %arg1[%c0_33, %c0_34], %143 {strides = array<i32>} : memref<1x128xf32, #tpu.memory_space<vmem>>, vector<1x128xf32>,
    return
  }
}

</mosaic_0001>

<llo_original>
// kernel: tpu_custom_call.1
$region0: #{tpu_custom_call.1}
  #allocation0 [shape = 'u32[]', space=smem, size = 0x4, offset = 0x4, fixed_abs, tag = 'smem constant byte address 0x4 - core index']
  #allocation1 [shape = 'u32[144,128]{1,0:T(1,128)}', space=vmem, size = 0x12000, scoped, tag = 'internal scratch']
  %s0 = inlined_call_operand.hbm [shape: f32[140,640], index: 0, kind: input, shape index: {}]
  %s1 = inlined_call_operand.hbm [shape: f32[1,128], index: 1, kind: output, shape index: {}]
  %s2 = sld [smem:[#allocation0]]
  $region18: #{tpu_custom_call.1} parent=0
    _
  %s4 = ssub.s32 1, %s2
  %s5 = scalar_select 0, %s4, %s2
  $region1: #{tpu_custom_call.1} parent=0
    #allocation2 [shape = 'u8[368640]{0}', space=vmem, size = 0x5a000, scoped, tag = 'input window, operand 0, single buffered']
    #allocation3 [shape = 's32[1]{0}', space=sflag, size = 0x4, scoped, tag = 'scoped memory for tpu_custom_call.1']
    #allocation4 [shape = 's32[1]{0}', space=sflag, size = 0x4, scoped, tag = 'scoped memory for tpu_custom_call.1']
    #allocation5 [shape = 'u8[512]{0}', space=vmem, size = 0x400, scoped, tag = 'output window, operand 0, single buffered']
    %6 = vsyncpa [#allocation3], 0
    %7 = vsyncpa [#allocation4], 0
    // Predicated region
    $region2: #{tpu_custom_call.1} parent=1 // pred_check
      _
    $region3: #{tpu_custom_call.1} parent=1 // pred_check_branch
      %9 = sbr.rel (0) target = $region5
    $region4: #{tpu_custom_call.1} parent=1 // pred_region
      %s11 = ssub.s32 11520, 11520
      %12 = vsyncadd [#allocation3], %s11
      %s13 = sshll.u32 [#allocation2], 4
      %s14 = int_to_ptr.vmem [resolvable:$true] %s13
      %19 = dma.hbm_to_vmem [thread:$0]  %s0, 11520, %s14, [#allocation3], 640, 640, 40
    $region5: #{tpu_custom_call.1} parent=1 // pred_fallthru
      _
    // Predicated region
    $region6: #{tpu_custom_call.1} parent=1 // pred_check
      _
    $region7: #{tpu_custom_call.1} parent=1 // pred_check_branch
      %21 = sbr.rel (0) target = $region9
    $region8: #{tpu_custom_call.1} parent=1 // pred_region
      %22 = dma.done [#allocation3], 11520
    $region9: #{tpu_custom_call.1} parent=1 // pred_fallthru
      _
    %s23 = scalar_lea.vmem [#allocation2], 641
    %v24 = vld [vmem:[%s23] ss:$8 sm:$0xf]
    %s25 = scalar_lea.vmem [#allocation2], 642
    %v26 = vld [vmem:[%s25] ss:$8 sm:$0xf]
    %s27 = scalar_lea.vmem [#allocation2], 643
    %v28 = vld [vmem:[%s27] ss:$8 sm:$0xf]
    %v29 = vld [vmem:[#allocation2 + $0x280] sm:$0xf0]
    %v30 = vld [vmem:[#allocation2 + $0x2a8] sm:$0xf]
    %s31 = scalar_lea.vmem [#allocation2], 640
    %v32 = vld [vmem:[%s31] ss:$8 sm:$0xf]
    %34 = vset.pattern.permute.xlu0 0
    %35 = vperm.xlu0 %34, %v29
    %v36 = vpop.permute.xlu0 %35
    %39 = vset.pattern.permute.xlu0 0
    %40 = vperm.xlu0 %39, %v30
    %v41 = vpop.permute.xlu0 %40
    %v44 = vlaneseq
    %v45 = vshrl.u32 %v44, 7
    %v46 = vsub.s32 0, %v45
    %v47 = vrot.slane %v32, %v46
    %v48 = vlaneseq
    %v49 = vshrl.u32 %v48, 7
    %v50 = vsub.s32 1, %v49
    %v51 = vrot.slane %v32, %v50
    %v52 = vlaneseq
    %v53 = vshrl.u32 %v52, 7
    %v54 = vsub.s32 2, %v53
    %v55 = vrot.slane %v32, %v54
    %v56 = vlaneseq
    %v57 = vshrl.u32 %v56, 7
    %v58 = vsub.s32 3, %v57
    %v59 = vrot.slane %v32, %v58
    %v64 = vmul.f32 %v36, %v47
    %v65 = vmul.f32 %v36, %v51
    %v66 = vmul.f32 %v36, %v55
    %v67 = vmul.f32 %v36, %v59
    %v68 = vmul.f32 %v41, %v47
    %v69 = vmul.f32 %v41, %v51
    %v70 = vmul.f32 %v41, %v55
    %v71 = vmul.f32 %v41, %v59
    %v73 = vlaneseq
    %v74 = vshrl.u32 %v73, 7
    %v75 = vsub.s32 0, %v74
    %v76 = vrot.slane %v24, %v75
    %v77 = vlaneseq
    %v78 = vshrl.u32 %v77, 7
    %v79 = vsub.s32 1, %v78
    %v80 = vrot.slane %v24, %v79
    %v81 = vlaneseq
    %v82 = vshrl.u32 %v81, 7
    %v83 = vsub.s32 2, %v82
    %v84 = vrot.slane %v24, %v83
    %v85 = vlaneseq
    %v86 = vshrl.u32 %v85, 7
    %v87 = vsub.s32 3, %v86
    %v88 = vrot.slane %v24, %v87
    %v93 = vadd.f32 %v64, %v76
    %v94 = vadd.f32 %v65, %v80
    %v95 = vadd.f32 %v66, %v84
    %v96 = vadd.f32 %v67, %v88
    %v97 = vadd.f32 %v68, %v76
    %v98 = vadd.f32 %v69, %v80
    %v99 = vadd.f32 %v70, %v84
    %v100 = vadd.f32 %v71, %v88
    %v101 = vld [vmem:[#allocation2] sm:$0xff]
    %v102 = vld [vmem:[#allocation2 + $0x8] sm:$0xff]
    %v103 = vld [vmem:[#allocation2 + $0x10] sm:$0xff]
    %v104 = vld [vmem:[#allocation2 + $0x18] sm:$0xff]
    %v105 = vld [vmem:[#allocation2 + $0x28] sm:$0xff]
    %v106 = vld [vmem:[#allocation2 + $0x30] sm:$0xff]
    %v107 = vld [vmem:[#allocation2 + $0x38] sm:$0xff]
    %v108 = vld [vmem:[#allocation2 + $0x40] sm:$0xff]
    %v109 = vld [vmem:[#allocation2 + $0x50] sm:$0xff]
    %v110 = vld [vmem:[#allocation2 + $0x58] sm:$0xff]
    %v111 = vld [vmem:[#allocation2 + $0x60] sm:$0xff]
    %v112 = vld [vmem:[#allocation2 + $0x68] sm:$0xff]
    %v113 = vld [vmem:[#allocation2 + $0x78] sm:$0xff]
    %v114 = vld [vmem:[#allocation2 + $0x80] sm:$0xff]
    %v115 = vld [vmem:[#allocation2 + $0x88] sm:$0xff]
    %v116 = vld [vmem:[#allocation2 + $0x90] sm:$0xff]
    %v117 = vld [vmem:[#allocation2 + $0xa0] sm:$0xff]
    %v118 = vld [vmem:[#allocation2 + $0xa8] sm:$0xff]
    %v119 = vld [vmem:[#allocation2 + $0xb0] sm:$0xff]
    %v120 = vld [vmem:[#allocation2 + $0xb8] sm:$0xff]
    %v121 = vld [vmem:[#allocation2 + $0xc8] sm:$0xff]
    %v122 = vld [vmem:[#allocation2 + $0xd0] sm:$0xff]
    %v123 = vld [vmem:[#allocation2 + $0xd8] sm:$0xff]
    %v124 = vld [vmem:[#allocation2 + $0xe0] sm:$0xff]
    %v125 = vld [vmem:[#allocation2 + $0xf0] sm:$0xff]
    %v126 = vld [vmem:[#allocation2 + $0xf8] sm:$0xff]
    %v127 = vld [vmem:[#allocation2 + $0x100] sm:$0xff]
    %v128 = vld [vmem:[#allocation2 + $0x108] sm:$0xff]
    %v129 = vld [vmem:[#allocation2 + $0x118] sm:$0xff]
    %v130 = vld [vmem:[#allocation2 + $0x120] sm:$0xff]
    %v131 = vld [vmem:[#allocation2 + $0x128] sm:$0xff]
    %v132 = vld [vmem:[#allocation2 + $0x130] sm:$0xff]
    %v133 = vld [vmem:[#allocation2 + $0x140] sm:$0xff]
    %v134 = vld [vmem:[#allocation2 + $0x148] sm:$0xff]
    %v135 = vld [vmem:[#allocation2 + $0x150] sm:$0xff]
    %v136 = vld [vmem:[#allocation2 + $0x158] sm:$0xff]
    %v137 = vld [vmem:[#allocation2 + $0x168] sm:$0xff]
    %v138 = vld [vmem:[#allocation2 + $0x170] sm:$0xff]
    %v139 = vld [vmem:[#allocation2 + $0x178] sm:$0xff]
    %v140 = vld [vmem:[#allocation2 + $0x180] sm:$0xff]
    %v141 = vld [vmem:[#allocation2 + $0x190] sm:$0xff]
    %v142 = vld [vmem:[#allocation2 + $0x198] sm:$0xff]
    %v143 = vld [vmem:[#allocation2 + $0x1a0] sm:$0xff]
    %v144 = vld [vmem:[#allocation2 + $0x1a8] sm:$0xff]
    %v145 = vld [vmem:[#allocation2 + $0x1b8] sm:$0xff]
    %v146 = vld [vmem:[#allocation2 + $0x1c0] sm:$0xff]
    %v147 = vld [vmem:[#allocation2 + $0x1c8] sm:$0xff]
    %v148 = vld [vmem:[#allocation2 + $0x1d0] sm:$0xff]
    %v149 = vld [vmem:[#allocation2 + $0x1e0] sm:$0xff]
    %v150 = vld [vmem:[#allocation2 + $0x1e8] sm:$0xff]
    %v151 = vld [vmem:[#allocation2 + $0x1f0] sm:$0xff]
    %v152 = vld [vmem:[#allocation2 + $0x1f8] sm:$0xff]
    %v153 = vld [vmem:[#allocation2 + $0x208] sm:$0xff]
    %v154 = vld [vmem:[#allocation2 + $0x210] sm:$0xff]
    %v155 = vld [vmem:[#allocation2 + $0x218] sm:$0xff]
    %v156 = vld [vmem:[#allocation2 + $0x220] sm:$0xff]
    %v157 = vld [vmem:[#allocation2 + $0x230] sm:$0xff]
    %v158 = vld [vmem:[#allocation2 + $0x238] sm:$0xff]
    %v159 = vld [vmem:[#allocation2 + $0x240] sm:$0xff]
    %v160 = vld [vmem:[#allocation2 + $0x248] sm:$0xff]
    %v161 = vld [vmem:[#allocation2 + $0x258] sm:$0xff]
    %v162 = vld [vmem:[#allocation2 + $0x260] sm:$0xff]
    %v163 = vld [vmem:[#allocation2 + $0x268] sm:$0xff]
    %v164 = vld [vmem:[#allocation2 + $0x270] sm:$0xff]
    %165 = vmatprep.subr.mxu0 %v162
    %166 = vmatpush1.msra.mxu0 %v161
    %167 = vmatprep.subr.mxu0 %v158
    %168 = vmatpush1.msra.mxu0 %v157
    %169 = vmatprep.subr.mxu0 %v154
    %170 = vmatpush1.msra.mxu0 %v153
    %171 = vmatprep.subr.mxu0 %v150
    %172 = vmatpush1.msra.mxu0 %v149
    %173 = vmatprep.subr.mxu0 %v146
    %174 = vmatpush1.msra.mxu0 %v145
    %175 = vmatprep.subr.mxu0 %v142
    %176 = vmatpush1.msra.mxu0 %v141
    %177 = vmatprep.subr.mxu0 %v138
    %178 = vmatpush1.msra.mxu0 %v137
    %179 = vmatprep.subr.mxu0 %v134
    %180 = vmatpush1.msra.mxu0 %v133
    %181 = vmatprep.subr.mxu0 %v130
    %182 = vmatpush1.msra.mxu0 %v129
    %183 = vmatprep.subr.mxu0 %v126
    %184 = vmatpush1.msra.mxu0 %v125
    %185 = vmatprep.subr.mxu0 %v122
    %186 = vmatpush1.msra.mxu0 %v121
    %187 = vmatprep.subr.mxu0 %v118
    %188 = vmatpush1.msra.mxu0 %v117
    %189 = vmatprep.subr.mxu0 %v114
    %190 = vmatpush1.msra.mxu0 %v113
    %191 = vmatprep.subr.mxu0 %v110
    %192 = vmatpush1.msra.mxu0 %v109
    %193 = vmatprep.subr.mxu0 %v106
    %194 = vmatpush1.msra.mxu0 %v105
    %195 = vmatprep.subr.mxu0 %v102
    %196 = vmatpush1.msra.mxu0 %v101
    %197 = vmatprep.subr.mxu0 0.0
    %198 = vmatpush2.msra.mxu0 0.0
    %199 = vmatprep.subr.mxu0 0.0
    %200 = vmatpush2.msra.mxu0 0.0
    %201 = vmatprep.subr.mxu0 0.0
    %202 = vmatpush2.msra.mxu0 0.0
    %203 = vmatprep.subr.mxu0 0.0
    %204 = vmatpush2.msra.mxu0 0.0
    %205 = vmatprep.subr.mxu0 0.0
    %206 = vmatpush2.msra.mxu0 0.0
    %207 = vmatprep.subr.mxu0 0.0
    %208 = vmatpush2.msra.mxu0 0.0
    %209 = vmatprep.subr.mxu0 0.0
    %210 = vmatpush2.msra.mxu0 0.0
    %211 = vmatprep.subr.mxu0 0.0
    %212 = vmatpush2.msra.mxu0 0.0
    %213 = vmatprep.subr.mxu0 0.0
    %214 = vmatpush2.msra.mxu0 0.0
    %215 = vmatprep.subr.mxu0 0.0
    %216 = vmatpush2.msra.mxu0 0.0
    %217 = vmatprep.subr.mxu0 0.0
    %218 = vmatpush2.msra.mxu0 0.0
    %219 = vmatprep.subr.mxu0 0.0
    %220 = vmatpush2.msra.mxu0 0.0
    %221 = vmatprep.subr.mxu0 0.0
    %222 = vmatpush2.msra.mxu0 0.0
    %223 = vmatprep.subr.mxu0 0.0
    %224 = vmatpush2.msra.mxu0 0.0
    %225 = vmatprep.subr.mxu0 0.0
    %226 = vmatpush2.msra.mxu0 0.0
    %227 = vmatprep.subr.mxu0 0.0
    %228 = vmatpush2.msra.mxu0 0.0
    %229 = vmatprep.mubr.f32.mxu0 0.0
    %230 = vmatmul.mubr.f32.gmra.mxu0 0.0
    %v231 = vpop.f32.mrf.mxu0
    %v232 = vadd.f32 0.0, %v231
    %v233 = vpop.f32.mrf.mxu0
    %v234 = vadd.f32 0.0, %v233
    %235 = vdwg.mxu0
    %236 = vmatprep.subr.mxu0 %v164
    %237 = vmatpush1.msra.mxu0 %v163
    %238 = vmatprep.subr.mxu0 %v160
    %239 = vmatpush1.msra.mxu0 %v159
    %240 = vmatprep.subr.mxu0 %v156
    %241 = vmatpush1.msra.mxu0 %v155
    %242 = vmatprep.subr.mxu0 %v152
    %243 = vmatpush1.msra.mxu0 %v151
    %244 = vmatprep.subr.mxu0 %v148
    %245 = vmatpush1.msra.mxu0 %v147
    %246 = vmatprep.subr.mxu0 %v144
    %247 = vmatpush1.msra.mxu0 %v143
    %248 = vmatprep.subr.mxu0 %v140
    %249 = vmatpush1.msra.mxu0 %v139
    %250 = vmatprep.subr.mxu0 %v136
    %251 = vmatpush1.msra.mxu0 %v135
    %252 = vmatprep.subr.mxu0 %v132
    %253 = vmatpush1.msra.mxu0 %v131
    %254 = vmatprep.subr.mxu0 %v128
    %255 = vmatpush1.msra.mxu0 %v127
    %256 = vmatprep.subr.mxu0 %v124
    %257 = vmatpush1.msra.mxu0 %v123
    %258 = vmatprep.subr.mxu0 %v120
    %259 = vmatpush1.msra.mxu0 %v119
    %260 = vmatprep.subr.mxu0 %v116
    %261 = vmatpush1.msra.mxu0 %v115
    %262 = vmatprep.subr.mxu0 %v112
    %263 = vmatpush1.msra.mxu0 %v111
    %264 = vmatprep.subr.mxu0 %v108
    %265 = vmatpush1.msra.mxu0 %v107
    %266 = vmatprep.subr.mxu0 %v104
    %267 = vmatpush1.msra.mxu0 %v103
    %268 = vmatprep.subr.mxu0 0.0
    %269 = vmatpush2.msra.mxu0 0.0
    %270 = vmatprep.subr.mxu0 0.0
    %271 = vmatpush2.msra.mxu0 0.0
    %272 = vmatprep.subr.mxu0 0.0
    %273 = vmatpush2.msra.mxu0 0.0
    %274 = vmatprep.subr.mxu0 0.0
    %275 = vmatpush2.msra.mxu0 0.0
    %276 = vmatprep.subr.mxu0 0.0
    %277 = vmatpush2.msra.mxu0 0.0
    %278 = vmatprep.subr.mxu0 0.0
    %279 = vmatpush2.msra.mxu0 0.0
    %280 = vmatprep.subr.mxu0 0.0
    %281 = vmatpush2.msra.mxu0 0.0
    %282 = vmatprep.subr.mxu0 0.0
    %283 = vmatpush2.msra.mxu0 0.0
    %284 = vmatprep.subr.mxu0 0.0
    %285 = vmatpush2.msra.mxu0 0.0
    %286 = vmatprep.subr.mxu0 0.0
    %287 = vmatpush2.msra.mxu0 0.0
    %288 = vmatprep.subr.mxu0 0.0
    %289 = vmatpush2.msra.mxu0 0.0
    %290 = vmatprep.subr.mxu0 0.0
    %291 = vmatpush2.msra.mxu0 0.0
    %292 = vmatprep.subr.mxu0 0.0
    %293 = vmatpush2.msra.mxu0 0.0
    %294 = vmatprep.subr.mxu0 0.0
    %295 = vmatpush2.msra.mxu0 0.0
    %296 = vmatprep.subr.mxu0 0.0
    %297 = vmatpush2.msra.mxu0 0.0
    %298 = vmatprep.subr.mxu0 0.0
    %299 = vmatpush2.msra.mxu0 0.0
    %300 = vmatprep.mubr.f32.mxu0 0.0
    %301 = vmatmul.mubr.f32.gmra.mxu0 0.0
    %v302 = vpop.f32.mrf.mxu0
    %v303 = vadd.f32 0.0, %v302
    %v304 = vpop.f32.mrf.mxu0
    %v305 = vadd.f32 0.0, %v304
    %306 = vdwg.mxu0
    %v311 = vrot.slane %v232, 4
    %v312 = vrot.slane %v234, 4
    %v313 = vrot.slane %v303, 4
    %v314 = vrot.slane %v305, 4
    %v319 = vadd.f32 %v93, %v311
    %v320 = vadd.f32 %v94, %v312
    %v321 = vadd.f32 %v95, %v313
    %v322 = vadd.f32 %v96, %v314
    %v323 = vtanh.pop %v319
    %v324 = vtanh.pop %v320
    %v325 = vtanh.pop %v321
    %v326 = vtanh.pop %v322
    %v328 = vlaneseq
    %v329 = vshrl.u32 %v328, 7
    %v330 = vsub.s32 0, %v329
    %v331 = vrot.slane %v26, %v330
    %v332 = vlaneseq
    %v333 = vshrl.u32 %v332, 7
    %v334 = vsub.s32 1, %v333
    %v335 = vrot.slane %v26, %v334
    %v336 = vlaneseq
    %v337 = vshrl.u32 %v336, 7
    %v338 = vsub.s32 2, %v337
    %v339 = vrot.slane %v26, %v338
    %v340 = vlaneseq
    %v341 = vshrl.u32 %v340, 7
    %v342 = vsub.s32 3, %v341
    %v343 = vrot.slane %v26, %v342
    %v348 = vmul.f32 %v323, %v331
    %v349 = vmul.f32 %v324, %v335
    %v350 = vmul.f32 %v325, %v339
    %v351 = vmul.f32 %v326, %v343
    %v353 = vlaneseq
    %v354 = vshrl.u32 %v353, 7
    %v355 = vsub.s32 0, %v354
    %v356 = vrot.slane %v28, %v355
    %v357 = vlaneseq
    %v358 = vshrl.u32 %v357, 7
    %v359 = vsub.s32 1, %v358
    %v360 = vrot.slane %v28, %v359
    %v361 = vlaneseq
    %v362 = vshrl.u32 %v361, 7
    %v363 = vsub.s32 2, %v362
    %v364 = vrot.slane %v28, %v363
    %v365 = vlaneseq
    %v366 = vshrl.u32 %v365, 7
    %v367 = vsub.s32 3, %v366
    %v368 = vrot.slane %v28, %v367
    %v373 = vadd.f32 %v348, %v356
    %v374 = vadd.f32 %v349, %v360
    %v375 = vadd.f32 %v350, %v364
    %v376 = vadd.f32 %v351, %v368
    %v377 = vmul.f32 %v374, 0.0
    %v378 = vmul.f32 %v373, %v375
    %v379 = vadd.f32 %v377, %v378
    %v380 = vtanh.pop %v379
    %v381 = vmul.f32 %v376, %v380
    %v383 = vrot.slane %v381, 4
    %385 = vmatprep.subr.mxu0 %v162
    %386 = vmatpush1.msra.mxu0 %v161
    %387 = vmatprep.subr.mxu0 %v158
    %388 = vmatpush1.msra.mxu0 %v157
    %389 = vmatprep.subr.mxu0 %v154
    %390 = vmatpush1.msra.mxu0 %v153
    %391 = vmatprep.subr.mxu0 %v150
    %392 = vmatpush1.msra.mxu0 %v149
    %393 = vmatprep.subr.mxu0 %v146
    %394 = vmatpush1.msra.mxu0 %v145
    %395 = vmatprep.subr.mxu0 %v142
    %396 = vmatpush1.msra.mxu0 %v141
    %397 = vmatprep.subr.mxu0 %v138
    %398 = vmatpush1.msra.mxu0 %v137
    %399 = vmatprep.subr.mxu0 %v134
    %400 = vmatpush1.msra.mxu0 %v133
    %401 = vmatprep.subr.mxu0 %v130
    %402 = vmatpush1.msra.mxu0 %v129
    %403 = vmatprep.subr.mxu0 %v126
    %404 = vmatpush1.msra.mxu0 %v125
    %405 = vmatprep.subr.mxu0 %v122
    %406 = vmatpush1.msra.mxu0 %v121
    %407 = vmatprep.subr.mxu0 %v118
    %408 = vmatpush1.msra.mxu0 %v117
    %409 = vmatprep.subr.mxu0 %v114
    %410 = vmatpush1.msra.mxu0 %v113
    %411 = vmatprep.subr.mxu0 %v110
    %412 = vmatpush1.msra.mxu0 %v109
    %413 = vmatprep.subr.mxu0 %v106
    %414 = vmatpush1.msra.mxu0 %v105
    %415 = vmatprep.subr.mxu0 %v102
    %416 = vmatpush1.msra.mxu0 %v101
    %417 = vmatprep.subr.mxu0 0.0
    %418 = vmatpush2.msra.mxu0 0.0
    %419 = vmatprep.subr.mxu0 0.0
    %420 = vmatpush2.msra.mxu0 0.0
    %421 = vmatprep.subr.mxu0 0.0
    %422 = vmatpush2.msra.mxu0 0.0
    %423 = vmatprep.subr.mxu0 0.0
    %424 = vmatpush2.msra.mxu0 0.0
    %425 = vmatprep.subr.mxu0 0.0
    %426 = vmatpush2.msra.mxu0 0.0
    %427 = vmatprep.subr.mxu0 0.0
    %428 = vmatpush2.msra.mxu0 0.0
    %429 = vmatprep.subr.mxu0 0.0
    %430 = vmatpush2.msra.mxu0 0.0
    %431 = vmatprep.subr.mxu0 0.0
    %432 = vmatpush2.msra.mxu0 0.0
    %433 = vmatprep.subr.mxu0 0.0
    %434 = vmatpush2.msra.mxu0 0.0
    %435 = vmatprep.subr.mxu0 0.0
    %436 = vmatpush2.msra.mxu0 0.0
    %437 = vmatprep.subr.mxu0 0.0
    %438 = vmatpush2.msra.mxu0 0.0
    %439 = vmatprep.subr.mxu0 0.0
    %440 = vmatpush2.msra.mxu0 0.0
    %441 = vmatprep.subr.mxu0 0.0
    %442 = vmatpush2.msra.mxu0 0.0
    %443 = vmatprep.subr.mxu0 0.0
    %444 = vmatpush2.msra.mxu0 0.0
    %445 = vmatprep.subr.mxu0 0.0
    %446 = vmatpush2.msra.mxu0 0.0
    %447 = vmatprep.subr.mxu0 0.0
    %448 = vmatpush2.msra.mxu0 0.0
    %449 = vmatprep.mubr.f32.mxu0 0.0
    %450 = vmatmul.mubr.f32.gmra.mxu0 %v383
    %v451 = vpop.f32.mrf.mxu0
    %v452 = vadd.f32 0.0, %v451
    %v453 = vpop.f32.mrf.mxu0
    %v454 = vadd.f32 0.0, %v453
    %455 = vdwg.mxu0
    %456 = vmatprep.subr.mxu0 %v164
    %457 = vmatpush1.msra.mxu0 %v163
    %458 = vmatprep.subr.mxu0 %v160
    %459 = vmatpush1.msra.mxu0 %v159
    %460 = vmatprep.subr.mxu0 %v156
    %461 = vmatpush1.msra.mxu0 %v155
    %462 = vmatprep.subr.mxu0 %v152
    %463 = vmatpush1.msra.mxu0 %v151
    %464 = vmatprep.subr.mxu0 %v148
    %465 = vmatpush1.msra.mxu0 %v147
    %466 = vmatprep.subr.mxu0 %v144
    %467 = vmatpush1.msra.mxu0 %v143
    %468 = vmatprep.subr.mxu0 %v140
    %469 = vmatpush1.msra.mxu0 %v139
    %470 = vmatprep.subr.mxu0 %v136
    %471 = vmatpush1.msra.mxu0 %v135
    %472 = vmatprep.subr.mxu0 %v132
    %473 = vmatpush1.msra.mxu0 %v131
    %474 = vmatprep.subr.mxu0 %v128
    %475 = vmatpush1.msra.mxu0 %v127
    %476 = vmatprep.subr.mxu0 %v124
    %477 = vmatpush1.msra.mxu0 %v123
    %478 = vmatprep.subr.mxu0 %v120
    %479 = vmatpush1.msra.mxu0 %v119
    %480 = vmatprep.subr.mxu0 %v116
    %481 = vmatpush1.msra.mxu0 %v115
    %482 = vmatprep.subr.mxu0 %v112
    %483 = vmatpush1.msra.mxu0 %v111
    %484 = vmatprep.subr.mxu0 %v108
    %485 = vmatpush1.msra.mxu0 %v107
    %486 = vmatprep.subr.mxu0 %v104
    %487 = vmatpush1.msra.mxu0 %v103
    %488 = vmatprep.subr.mxu0 0.0
    %489 = vmatpush2.msra.mxu0 0.0
    %490 = vmatprep.subr.mxu0 0.0
    %491 = vmatpush2.msra.mxu0 0.0
    %492 = vmatprep.subr.mxu0 0.0
    %493 = vmatpush2.msra.mxu0 0.0
    %494 = vmatprep.subr.mxu0 0.0
    %495 = vmatpush2.msra.mxu0 0.0
    %496 = vmatprep.subr.mxu0 0.0
    %497 = vmatpush2.msra.mxu0 0.0
    %498 = vmatprep.subr.mxu0 0.0
    %499 = vmatpush2.msra.mxu0 0.0
    %500 = vmatprep.subr.mxu0 0.0
    %501 = vmatpush2.msra.mxu0 0.0
    %502 = vmatprep.subr.mxu0 0.0
    %503 = vmatpush2.msra.mxu0 0.0
    %504 = vmatprep.subr.mxu0 0.0
    %505 = vmatpush2.msra.mxu0 0.0
    %506 = vmatprep.subr.mxu0 0.0
    %507 = vmatpush2.msra.mxu0 0.0
    %508 = vmatprep.subr.mxu0 0.0
    %509 = vmatpush2.msra.mxu0 0.0
    %510 = vmatprep.subr.mxu0 0.0
    %511 = vmatpush2.msra.mxu0 0.0
    %512 = vmatprep.subr.mxu0 0.0
    %513 = vmatpush2.msra.mxu0 0.0
    %514 = vmatprep.subr.mxu0 0.0
    %515 = vmatpush2.msra.mxu0 0.0
    %516 = vmatprep.subr.mxu0 0.0
    %517 = vmatpush2.msra.mxu0 0.0
    %518 = vmatprep.subr.mxu0 0.0
    %519 = vmatpush2.msra.mxu0 0.0
    %520 = vmatprep.mubr.f32.mxu0 0.0
    %521 = vmatmul.mubr.f32.gmra.mxu0 %v383
    %v522 = vpop.f32.mrf.mxu0
    %v523 = vadd.f32 0.0, %v522
    %v524 = vpop.f32.mrf.mxu0
    %v525 = vadd.f32 0.0, %v524
    %526 = vdwg.mxu0
    %v531 = vrot.slane %v452, 3
    %v532 = vrot.slane %v454, 3
    %v533 = vrot.slane %v523, 3
    %v534 = vrot.slane %v525, 3
    %v539 = vadd.f32 %v93, %v531
    %v540 = vadd.f32 %v94, %v532
    %v541 = vadd.f32 %v95, %v533
    %v542 = vadd.f32 %v96, %v534
    %v543 = vtanh.pop %v539
    %v544 = vtanh.pop %v540
    %v545 = vtanh.pop %v541
    %v546 = vtanh.pop %v542
    %v547 = vmul.f32 %v543, %v331
    %v548 = vmul.f32 %v544, %v335
    %v549 = vmul.f32 %v545, %v339
    %v550 = vmul.f32 %v546, %v343
    %v551 = vadd.f32 %v547, %v356
    %v552 = vadd.f32 %v548, %v360
    %v553 = vadd.f32 %v549, %v364
    %v554 = vadd.f32 %v550, %v368
    %v556 = vrot.slane %v379, 7
    %v558 = vmul.f32 %v552, %v556
    %v559 = vmul.f32 %v551, %v553
    %v560 = vadd.f32 %v558, %v559
    %v561 = vtanh.pop %v560
    %v562 = vmul.f32 %v554, %v561
    %v564 = vrot.slane %v562, 5
    %566 = vmatprep.subr.mxu0 %v162
    %567 = vmatpush1.msra.mxu0 %v161
    %568 = vmatprep.subr.mxu0 %v158
    %569 = vmatpush1.msra.mxu0 %v157
    %570 = vmatprep.subr.mxu0 %v154
    %571 = vmatpush1.msra.mxu0 %v153
    %572 = vmatprep.subr.mxu0 %v150
    %573 = vmatpush1.msra.mxu0 %v149
    %574 = vmatprep.subr.mxu0 %v146
    %575 = vmatpush1.msra.mxu0 %v145
    %576 = vmatprep.subr.mxu0 %v142
    %577 = vmatpush1.msra.mxu0 %v141
    %578 = vmatprep.subr.mxu0 %v138
    %579 = vmatpush1.msra.mxu0 %v137
    %580 = vmatprep.subr.mxu0 %v134
    %581 = vmatpush1.msra.mxu0 %v133
    %582 = vmatprep.subr.mxu0 %v130
    %583 = vmatpush1.msra.mxu0 %v129
    %584 = vmatprep.subr.mxu0 %v126
    %585 = vmatpush1.msra.mxu0 %v125
    %586 = vmatprep.subr.mxu0 %v122
    %587 = vmatpush1.msra.mxu0 %v121
    %588 = vmatprep.subr.mxu0 %v118
    %589 = vmatpush1.msra.mxu0 %v117
    %590 = vmatprep.subr.mxu0 %v114
    %591 = vmatpush1.msra.mxu0 %v113
    %592 = vmatprep.subr.mxu0 %v110
    %593 = vmatpush1.msra.mxu0 %v109
    %594 = vmatprep.subr.mxu0 %v106
    %595 = vmatpush1.msra.mxu0 %v105
    %596 = vmatprep.subr.mxu0 %v102
    %597 = vmatpush1.msra.mxu0 %v101
    %598 = vmatprep.subr.mxu0 0.0
    %599 = vmatpush2.msra.mxu0 0.0
    %600 = vmatprep.subr.mxu0 0.0
    %601 = vmatpush2.msra.mxu0 0.0
    %602 = vmatprep.subr.mxu0 0.0
    %603 = vmatpush2.msra.mxu0 0.0
    %604 = vmatprep.subr.mxu0 0.0
    %605 = vmatpush2.msra.mxu0 0.0
    %606 = vmatprep.subr.mxu0 0.0
    %607 = vmatpush2.msra.mxu0 0.0
    %608 = vmatprep.subr.mxu0 0.0
    %609 = vmatpush2.msra.mxu0 0.0
    %610 = vmatprep.subr.mxu0 0.0
    %611 = vmatpush2.msra.mxu0 0.0
    %612 = vmatprep.subr.mxu0 0.0
    %613 = vmatpush2.msra.mxu0 0.0
    %614 = vmatprep.subr.mxu0 0.0
    %615 = vmatpush2.msra.mxu0 0.0
    %616 = vmatprep.subr.mxu0 0.0
    %617 = vmatpush2.msra.mxu0 0.0
    %618 = vmatprep.subr.mxu0 0.0
    %619 = vmatpush2.msra.mxu0 0.0
    %620 = vmatprep.subr.mxu0 0.0
    %621 = vmatpush2.msra.mxu0 0.0
    %622 = vmatprep.subr.mxu0 0.0
    %623 = vmatpush2.msra.mxu0 0.0
    %624 = vmatprep.subr.mxu0 0.0
    %625 = vmatpush2.msra.mxu0 0.0
    %626 = vmatprep.subr.mxu0 0.0
    %627 = vmatpush2.msra.mxu0 0.0
    %628 = vmatprep.subr.mxu0 0.0
    %629 = vmatpush2.msra.mxu0 0.0
    %630 = vmatprep.mubr.f32.mxu0 0.0
    %631 = vmatmul.mubr.f32.gmra.mxu0 %v564
    %v632 = vpop.f32.mrf.mxu0
    %v633 = vadd.f32 0.0, %v632
    %v634 = vpop.f32.mrf.mxu0
    %v635 = vadd.f32 0.0, %v634
    %636 = vdwg.mxu0
    %637 = vmatprep.subr.mxu0 %v164
    %638 = vmatpush1.msra.mxu0 %v163
    %639 = vmatprep.subr.mxu0 %v160
    %640 = vmatpush1.msra.mxu0 %v159
    %641 = vmatprep.subr.mxu0 %v156
    %642 = vmatpush1.msra.mxu0 %v155
    %643 = vmatprep.subr.mxu0 %v152
    %644 = vmatpush1.msra.mxu0 %v151
    %645 = vmatprep.subr.mxu0 %v148
    %646 = vmatpush1.msra.mxu0 %v147
    %647 = vmatprep.subr.mxu0 %v144
    %648 = vmatpush1.msra.mxu0 %v143
    %649 = vmatprep.subr.mxu0 %v140
    %650 = vmatpush1.msra.mxu0 %v139
    %651 = vmatprep.subr.mxu0 %v136
    %652 = vmatpush1.msra.mxu0 %v135
    %653 = vmatprep.subr.mxu0 %v132
    %654 = vmatpush1.msra.mxu0 %v131
    %655 = vmatprep.subr.mxu0 %v128
    %656 = vmatpush1.msra.mxu0 %v127
    %657 = vmatprep.subr.mxu0 %v124
    %658 = vmatpush1.msra.mxu0 %v123
    %659 = vmatprep.subr.mxu0 %v120
    %660 = vmatpush1.msra.mxu0 %v119
    %661 = vmatprep.subr.mxu0 %v116
    %662 = vmatpush1.msra.mxu0 %v115
    %663 = vmatprep.subr.mxu0 %v112
    %664 = vmatpush1.msra.mxu0 %v111
    %665 = vmatprep.subr.mxu0 %v108
    %666 = vmatpush1.msra.mxu0 %v107
    %667 = vmatprep.subr.mxu0 %v104
    %668 = vmatpush1.msra.mxu0 %v103
    %669 = vmatprep.subr.mxu0 0.0
    %670 = vmatpush2.msra.mxu0 0.0
    %671 = vmatprep.subr.mxu0 0.0
    %672 = vmatpush2.msra.mxu0 0.0
    %673 = vmatprep.subr.mxu0 0.0
    %674 = vmatpush2.msra.mxu0 0.0
    %675 = vmatprep.subr.mxu0 0.0
    %676 = vmatpush2.msra.mxu0 0.0
    %677 = vmatprep.subr.mxu0 0.0
    %678 = vmatpush2.msra.mxu0 0.0
    %679 = vmatprep.subr.mxu0 0.0
    %680 = vmatpush2.msra.mxu0 0.0
    %681 = vmatprep.subr.mxu0 0.0
    %682 = vmatpush2.msra.mxu0 0.0
    %683 = vmatprep.subr.mxu0 0.0
    %684 = vmatpush2.msra.mxu0 0.0
    %685 = vmatprep.subr.mxu0 0.0
    %686 = vmatpush2.msra.mxu0 0.0
    %687 = vmatprep.subr.mxu0 0.0
    %688 = vmatpush2.msra.mxu0 0.0
    %689 = vmatprep.subr.mxu0 0.0
    %690 = vmatpush2.msra.mxu0 0.0
    %691 = vmatprep.subr.mxu0 0.0
    %692 = vmatpush2.msra.mxu0 0.0
    %693 = vmatprep.subr.mxu0 0.0
    %694 = vmatpush2.msra.mxu0 0.0
    %695 = vmatprep.subr.mxu0 0.0
    %696 = vmatpush2.msra.mxu0 0.0
    %697 = vmatprep.subr.mxu0 0.0
    %698 = vmatpush2.msra.mxu0 0.0
    %699 = vmatprep.subr.mxu0 0.0
    %700 = vmatpush2.msra.mxu0 0.0
    %701 = vmatprep.mubr.f32.mxu0 0.0
    %702 = vmatmul.mubr.f32.gmra.mxu0 %v564
    %v703 = vpop.f32.mrf.mxu0
    %v704 = vadd.f32 0.0, %v703
    %v705 = vpop.f32.mrf.mxu0
    %v706 = vadd.f32 0.0, %v705
    %707 = vdwg.mxu0
    %v712 = vrot.slane %v633, 2
    %v713 = vrot.slane %v635, 2
    %v714 = vrot.slane %v704, 2
    %v715 = vrot.slane %v706, 2
    %v720 = vadd.f32 %v93, %v712
    %v721 = vadd.f32 %v94, %v713
    %v722 = vadd.f32 %v95, %v714
    %v723 = vadd.f32 %v96, %v715
    %v724 = vtanh.pop %v720
    %v725 = vtanh.pop %v721
    %v726 = vtanh.pop %v722
    %v727 = vtanh.pop %v723
    %v728 = vmul.f32 %v724, %v331
    %v729 = vmul.f32 %v725, %v335
    %v730 = vmul.f32 %v726, %v339
    %v731 = vmul.f32 %v727, %v343
    %v732 = vadd.f32 %v728, %v356
    %v733 = vadd.f32 %v729, %v360
    %v734 = vadd.f32 %v730, %v364
    %v735 = vadd.f32 %v731, %v368
    %v737 = vrot.slane %v560, 7
    %v739 = vmul.f32 %v733, %v737
    %v740 = vmul.f32 %v732, %v734
    %v741 = vadd.f32 %v739, %v740
    %v742 = vtanh.pop %v741
    %v743 = vmul.f32 %v735, %v742
    %v745 = vrot.slane %v743, 6
    %747 = vmatprep.subr.mxu0 %v162
    %748 = vmatpush1.msra.mxu0 %v161
    %749 = vmatprep.subr.mxu0 %v158
    %750 = vmatpush1.msra.mxu0 %v157
    %751 = vmatprep.subr.mxu0 %v154
    %752 = vmatpush1.msra.mxu0 %v153
    %753 = vmatprep.subr.mxu0 %v150
    %754 = vmatpush1.msra.mxu0 %v149
    %755 = vmatprep.subr.mxu0 %v146
    %756 = vmatpush1.msra.mxu0 %v145
    %757 = vmatprep.subr.mxu0 %v142
    %758 = vmatpush1.msra.mxu0 %v141
    %759 = vmatprep.subr.mxu0 %v138
    %760 = vmatpush1.msra.mxu0 %v137
    %761 = vmatprep.subr.mxu0 %v134
    %762 = vmatpush1.msra.mxu0 %v133
    %763 = vmatprep.subr.mxu0 %v130
    %764 = vmatpush1.msra.mxu0 %v129
    %765 = vmatprep.subr.mxu0 %v126
    %766 = vmatpush1.msra.mxu0 %v125
    %767 = vmatprep.subr.mxu0 %v122
    %768 = vmatpush1.msra.mxu0 %v121
    %769 = vmatprep.subr.mxu0 %v118
    %770 = vmatpush1.msra.mxu0 %v117
    %771 = vmatprep.subr.mxu0 %v114
    %772 = vmatpush1.msra.mxu0 %v113
    %773 = vmatprep.subr.mxu0 %v110
    %774 = vmatpush1.msra.mxu0 %v109
    %775 = vmatprep.subr.mxu0 %v106
    %776 = vmatpush1.msra.mxu0 %v105
    %777 = vmatprep.subr.mxu0 %v102
    %778 = vmatpush1.msra.mxu0 %v101
    %779 = vmatprep.subr.mxu0 0.0
    %780 = vmatpush2.msra.mxu0 0.0
    %781 = vmatprep.subr.mxu0 0.0
    %782 = vmatpush2.msra.mxu0 0.0
    %783 = vmatprep.subr.mxu0 0.0
    %784 = vmatpush2.msra.mxu0 0.0
    %785 = vmatprep.subr.mxu0 0.0
    %786 = vmatpush2.msra.mxu0 0.0
    %787 = vmatprep.subr.mxu0 0.0
    %788 = vmatpush2.msra.mxu0 0.0
    %789 = vmatprep.subr.mxu0 0.0
    %790 = vmatpush2.msra.mxu0 0.0
    %791 = vmatprep.subr.mxu0 0.0
    %792 = vmatpush2.msra.mxu0 0.0
    %793 = vmatprep.subr.mxu0 0.0
    %794 = vmatpush2.msra.mxu0 0.0
    %795 = vmatprep.subr.mxu0 0.0
    %796 = vmatpush2.msra.mxu0 0.0
    %797 = vmatprep.subr.mxu0 0.0
    %798 = vmatpush2.msra.mxu0 0.0
    %799 = vmatprep.subr.mxu0 0.0
    %800 = vmatpush2.msra.mxu0 0.0
    %801 = vmatprep.subr.mxu0 0.0
    %802 = vmatpush2.msra.mxu0 0.0
    %803 = vmatprep.subr.mxu0 0.0
    %804 = vmatpush2.msra.mxu0 0.0
    %805 = vmatprep.subr.mxu0 0.0
    %806 = vmatpush2.msra.mxu0 0.0
    %807 = vmatprep.subr.mxu0 0.0
    %808 = vmatpush2.msra.mxu0 0.0
    %809 = vmatprep.subr.mxu0 0.0
    %810 = vmatpush2.msra.mxu0 0.0
    %811 = vmatprep.mubr.f32.mxu0 0.0
    %812 = vmatmul.mubr.f32.gmra.mxu0 %v745
    %v813 = vpop.f32.mrf.mxu0
    %v814 = vadd.f32 0.0, %v813
    %v815 = vpop.f32.mrf.mxu0
    %v816 = vadd.f32 0.0, %v815
    %817 = vdwg.mxu0
    %818 = vmatprep.subr.mxu0 %v164
    %819 = vmatpush1.msra.mxu0 %v163
    %820 = vmatprep.subr.mxu0 %v160
    %821 = vmatpush1.msra.mxu0 %v159
    %822 = vmatprep.subr.mxu0 %v156
    %823 = vmatpush1.msra.mxu0 %v155
    %824 = vmatprep.subr.mxu0 %v152
    %825 = vmatpush1.msra.mxu0 %v151
    %826 = vmatprep.subr.mxu0 %v148
    %827 = vmatpush1.msra.mxu0 %v147
    %828 = vmatprep.subr.mxu0 %v144
    %829 = vmatpush1.msra.mxu0 %v143
    %830 = vmatprep.subr.mxu0 %v140
    %831 = vmatpush1.msra.mxu0 %v139
    %832 = vmatprep.subr.mxu0 %v136
    %833 = vmatpush1.msra.mxu0 %v135
    %834 = vmatprep.subr.mxu0 %v132
    %835 = vmatpush1.msra.mxu0 %v131
    %836 = vmatprep.subr.mxu0 %v128
    %837 = vmatpush1.msra.mxu0 %v127
    %838 = vmatprep.subr.mxu0 %v124
    %839 = vmatpush1.msra.mxu0 %v123
    %840 = vmatprep.subr.mxu0 %v120
    %841 = vmatpush1.msra.mxu0 %v119
    %842 = vmatprep.subr.mxu0 %v116
    %843 = vmatpush1.msra.mxu0 %v115
    %844 = vmatprep.subr.mxu0 %v112
    %845 = vmatpush1.msra.mxu0 %v111
    %846 = vmatprep.subr.mxu0 %v108
    %847 = vmatpush1.msra.mxu0 %v107
    %848 = vmatprep.subr.mxu0 %v104
    %849 = vmatpush1.msra.mxu0 %v103
    %850 = vmatprep.subr.mxu0 0.0
    %851 = vmatpush2.msra.mxu0 0.0
    %852 = vmatprep.subr.mxu0 0.0
    %853 = vmatpush2.msra.mxu0 0.0
    %854 = vmatprep.subr.mxu0 0.0
    %855 = vmatpush2.msra.mxu0 0.0
    %856 = vmatprep.subr.mxu0 0.0
    %857 = vmatpush2.msra.mxu0 0.0
    %858 = vmatprep.subr.mxu0 0.0
    %859 = vmatpush2.msra.mxu0 0.0
    %860 = vmatprep.subr.mxu0 0.0
    %861 = vmatpush2.msra.mxu0 0.0
    %862 = vmatprep.subr.mxu0 0.0
    %863 = vmatpush2.msra.mxu0 0.0
    %864 = vmatprep.subr.mxu0 0.0
    %865 = vmatpush2.msra.mxu0 0.0
    %866 = vmatprep.subr.mxu0 0.0
    %867 = vmatpush2.msra.mxu0 0.0
    %868 = vmatprep.subr.mxu0 0.0
    %869 = vmatpush2.msra.mxu0 0.0
    %870 = vmatprep.subr.mxu0 0.0
    %871 = vmatpush2.msra.mxu0 0.0
    %872 = vmatprep.subr.mxu0 0.0
    %873 = vmatpush2.msra.mxu0 0.0
    %874 = vmatprep.subr.mxu0 0.0
    %875 = vmatpush2.msra.mxu0 0.0
    %876 = vmatprep.subr.mxu0 0.0
    %877 = vmatpush2.msra.mxu0 0.0
    %878 = vmatprep.subr.mxu0 0.0
    %879 = vmatpush2.msra.mxu0 0.0
    %880 = vmatprep.subr.mxu0 0.0
    %881 = vmatpush2.msra.mxu0 0.0
    %882 = vmatprep.mubr.f32.mxu0 0.0
    %883 = vmatmul.mubr.f32.gmra.mxu0 %v745
    %v884 = vpop.f32.mrf.mxu0
    %v885 = vadd.f32 0.0, %v884
    %v886 = vpop.f32.mrf.mxu0
    %v887 = vadd.f32 0.0, %v886
    %888 = vdwg.mxu0
    %v893 = vrot.slane %v814, 1
    %v894 = vrot.slane %v816, 1
    %v895 = vrot.slane %v885, 1
    %v896 = vrot.slane %v887, 1
    %v901 = vadd.f32 %v93, %v893
    %v902 = vadd.f32 %v94, %v894
    %v903 = vadd.f32 %v95, %v895
    %v904 = vadd.f32 %v96, %v896
    %v905 = vtanh.pop %v901
    %v906 = vtanh.pop %v902
    %v907 = vtanh.pop %v903
    %v908 = vtanh.pop %v904
    %v909 = vmul.f32 %v905, %v331
    %v910 = vmul.f32 %v906, %v335
    %v911 = vmul.f32 %v907, %v339
    %v912 = vmul.f32 %v908, %v343
    %v913 = vadd.f32 %v909, %v356
    %v914 = vadd.f32 %v910, %v360
    %v915 = vadd.f32 %v911, %v364
    %v916 = vadd.f32 %v912, %v368
    %v918 = vrot.slane %v741, 7
    %v920 = vmul.f32 %v914, %v918
    %v921 = vmul.f32 %v913, %v915
    %v922 = vadd.f32 %v920, %v921
    %v923 = vtanh.pop %v922
    %v924 = vmul.f32 %v916, %v923
    %v926 = vrot.slane %v924, 7
    %928 = vmatprep.subr.mxu0 %v162
    %929 = vmatpush1.msra.mxu0 %v161
    %930 = vmatprep.subr.mxu0 %v158
    %931 = vmatpush1.msra.mxu0 %v157
    %932 = vmatprep.subr.mxu0 %v154
    %933 = vmatpush1.msra.mxu0 %v153
    %934 = vmatprep.subr.mxu0 %v150
    %935 = vmatpush1.msra.mxu0 %v149
    %936 = vmatprep.subr.mxu0 %v146
    %937 = vmatpush1.msra.mxu0 %v145
    %938 = vmatprep.subr.mxu0 %v142
    %939 = vmatpush1.msra.mxu0 %v141
    %940 = vmatprep.subr.mxu0 %v138
    %941 = vmatpush1.msra.mxu0 %v137
    %942 = vmatprep.subr.mxu0 %v134
    %943 = vmatpush1.msra.mxu0 %v133
    %944 = vmatprep.subr.mxu0 %v130
    %945 = vmatpush1.msra.mxu0 %v129
    %946 = vmatprep.subr.mxu0 %v126
    %947 = vmatpush1.msra.mxu0 %v125
    %948 = vmatprep.subr.mxu0 %v122
    %949 = vmatpush1.msra.mxu0 %v121
    %950 = vmatprep.subr.mxu0 %v118
    %951 = vmatpush1.msra.mxu0 %v117
    %952 = vmatprep.subr.mxu0 %v114
    %953 = vmatpush1.msra.mxu0 %v113
    %954 = vmatprep.subr.mxu0 %v110
    %955 = vmatpush1.msra.mxu0 %v109
    %956 = vmatprep.subr.mxu0 %v106
    %957 = vmatpush1.msra.mxu0 %v105
    %958 = vmatprep.subr.mxu0 %v102
    %959 = vmatpush1.msra.mxu0 %v101
    %960 = vmatprep.subr.mxu0 0.0
    %961 = vmatpush2.msra.mxu0 0.0
    %962 = vmatprep.subr.mxu0 0.0
    %963 = vmatpush2.msra.mxu0 0.0
    %964 = vmatprep.subr.mxu0 0.0
    %965 = vmatpush2.msra.mxu0 0.0
    %966 = vmatprep.subr.mxu0 0.0
    %967 = vmatpush2.msra.mxu0 0.0
    %968 = vmatprep.subr.mxu0 0.0
    %969 = vmatpush2.msra.mxu0 0.0
    %970 = vmatprep.subr.mxu0 0.0
    %971 = vmatpush2.msra.mxu0 0.0
    %972 = vmatprep.subr.mxu0 0.0
    %973 = vmatpush2.msra.mxu0 0.0
    %974 = vmatprep.subr.mxu0 0.0
    %975 = vmatpush2.msra.mxu0 0.0
    %976 = vmatprep.subr.mxu0 0.0
    %977 = vmatpush2.msra.mxu0 0.0
    %978 = vmatprep.subr.mxu0 0.0
    %979 = vmatpush2.msra.mxu0 0.0
    %980 = vmatprep.subr.mxu0 0.0
    %981 = vmatpush2.msra.mxu0 0.0
    %982 = vmatprep.subr.mxu0 0.0
    %983 = vmatpush2.msra.mxu0 0.0
    %984 = vmatprep.subr.mxu0 0.0
    %985 = vmatpush2.msra.mxu0 0.0
    %986 = vmatprep.subr.mxu0 0.0
    %987 = vmatpush2.msra.mxu0 0.0
    %988 = vmatprep.subr.mxu0 0.0
    %989 = vmatpush2.msra.mxu0 0.0
    %990 = vmatprep.subr.mxu0 0.0
    %991 = vmatpush2.msra.mxu0 0.0
    %992 = vmatprep.mubr.f32.mxu0 0.0
    %993 = vmatmul.mubr.f32.gmra.mxu0 %v926
    %v994 = vpop.f32.mrf.mxu0
    %v995 = vadd.f32 0.0, %v994
    %v996 = vpop.f32.mrf.mxu0
    %v997 = vadd.f32 0.0, %v996
    %998 = vdwg.mxu0
    %999 = vmatprep.subr.mxu0 %v164
    %1000 = vmatpush1.msra.mxu0 %v163
    %1001 = vmatprep.subr.mxu0 %v160
    %1002 = vmatpush1.msra.mxu0 %v159
    %1003 = vmatprep.subr.mxu0 %v156
    %1004 = vmatpush1.msra.mxu0 %v155
    %1005 = vmatprep.subr.mxu0 %v152
    %1006 = vmatpush1.msra.mxu0 %v151
    %1007 = vmatprep.subr.mxu0 %v148
    %1008 = vmatpush1.msra.mxu0 %v147
    %1009 = vmatprep.subr.mxu0 %v144
    %1010 = vmatpush1.msra.mxu0 %v143
    %1011 = vmatprep.subr.mxu0 %v140
    %1012 = vmatpush1.msra.mxu0 %v139
    %1013 = vmatprep.subr.mxu0 %v136
    %1014 = vmatpush1.msra.mxu0 %v135
    %1015 = vmatprep.subr.mxu0 %v132
    %1016 = vmatpush1.msra.mxu0 %v131
    %1017 = vmatprep.subr.mxu0 %v128
    %1018 = vmatpush1.msra.mxu0 %v127
    %1019 = vmatprep.subr.mxu0 %v124
    %1020 = vmatpush1.msra.mxu0 %v123
    %1021 = vmatprep.subr.mxu0 %v120
    %1022 = vmatpush1.msra.mxu0 %v119
    %1023 = vmatprep.subr.mxu0 %v116
    %1024 = vmatpush1.msra.mxu0 %v115
    %1025 = vmatprep.subr.mxu0 %v112
    %1026 = vmatpush1.msra.mxu0 %v111
    %1027 = vmatprep.subr.mxu0 %v108
    %1028 = vmatpush1.msra.mxu0 %v107
    %1029 = vmatprep.subr.mxu0 %v104
    %1030 = vmatpush1.msra.mxu0 %v103
    %1031 = vmatprep.subr.mxu0 0.0
    %1032 = vmatpush2.msra.mxu0 0.0
    %1033 = vmatprep.subr.mxu0 0.0
    %1034 = vmatpush2.msra.mxu0 0.0
    %1035 = vmatprep.subr.mxu0 0.0
    %1036 = vmatpush2.msra.mxu0 0.0
    %1037 = vmatprep.subr.mxu0 0.0
    %1038 = vmatpush2.msra.mxu0 0.0
    %1039 = vmatprep.subr.mxu0 0.0
    %1040 = vmatpush2.msra.mxu0 0.0
    %1041 = vmatprep.subr.mxu0 0.0
    %1042 = vmatpush2.msra.mxu0 0.0
    %1043 = vmatprep.subr.mxu0 0.0
    %1044 = vmatpush2.msra.mxu0 0.0
    %1045 = vmatprep.subr.mxu0 0.0
    %1046 = vmatpush2.msra.mxu0 0.0
    %1047 = vmatprep.subr.mxu0 0.0
    %1048 = vmatpush2.msra.mxu0 0.0
    %1049 = vmatprep.subr.mxu0 0.0
    %1050 = vmatpush2.msra.mxu0 0.0
    %1051 = vmatprep.subr.mxu0 0.0
    %1052 = vmatpush2.msra.mxu0 0.0
    %1053 = vmatprep.subr.mxu0 0.0
    %1054 = vmatpush2.msra.mxu0 0.0
    %1055 = vmatprep.subr.mxu0 0.0
    %1056 = vmatpush2.msra.mxu0 0.0
    %1057 = vmatprep.subr.mxu0 0.0
    %1058 = vmatpush2.msra.mxu0 0.0
    %1059 = vmatprep.subr.mxu0 0.0
    %1060 = vmatpush2.msra.mxu0 0.0
    %1061 = vmatprep.subr.mxu0 0.0
    %1062 = vmatpush2.msra.mxu0 0.0
    %1063 = vmatprep.mubr.f32.mxu0 0.0
    %1064 = vmatmul.mubr.f32.gmra.mxu0 %v926
    %v1065 = vpop.f32.mrf.mxu0
    %v1066 = vadd.f32 0.0, %v1065
    %v1067 = vpop.f32.mrf.mxu0
    %v1068 = vadd.f32 0.0, %v1067
    %1069 = vdwg.mxu0
    %v1070 = vadd.f32 %v97, %v995
    %v1071 = vadd.f32 %v98, %v997
    %v1072 = vadd.f32 %v99, %v1066
    %v1073 = vadd.f32 %v100, %v1068
    %v1074 = vtanh.pop %v1070
    %v1075 = vtanh.pop %v1071
    %v1076 = vtanh.pop %v1072
    %v1077 = vtanh.pop %v1073
    %v1078 = vmul.f32 %v1074, %v331
    %v1079 = vmul.f32 %v1075, %v335
    %v1080 = vmul.f32 %v1076, %v339
    %v1081 = vmul.f32 %v1077, %v343
    %v1082 = vadd.f32 %v1078, %v356
    %v1083 = vadd.f32 %v1079, %v360
    %v1084 = vadd.f32 %v1080, %v364
    %v1085 = vadd.f32 %v1081, %v368
    %v1087 = vrot.slane %v922, 7
    %v1089 = vmul.f32 %v1083, %v1087
    %v1090 = vmul.f32 %v1082, %v1084
    %v1091 = vadd.f32 %v1089, %v1090
    %v1092 = vtanh.pop %v1091
    %v1093 = vmul.f32 %v1085, %v1092
    %1094 = vmatprep.subr.mxu0 %v162
    %1095 = vmatpush1.msra.mxu0 %v161
    %1096 = vmatprep.subr.mxu0 %v158
    %1097 = vmatpush1.msra.mxu0 %v157
    %1098 = vmatprep.subr.mxu0 %v154
    %1099 = vmatpush1.msra.mxu0 %v153
    %1100 = vmatprep.subr.mxu0 %v150
    %1101 = vmatpush1.msra.mxu0 %v149
    %1102 = vmatprep.subr.mxu0 %v146
    %1103 = vmatpush1.msra.mxu0 %v145
    %1104 = vmatprep.subr.mxu0 %v142
    %1105 = vmatpush1.msra.mxu0 %v141
    %1106 = vmatprep.subr.mxu0 %v138
    %1107 = vmatpush1.msra.mxu0 %v137
    %1108 = vmatprep.subr.mxu0 %v134
    %1109 = vmatpush1.msra.mxu0 %v133
    %1110 = vmatprep.subr.mxu0 %v130
    %1111 = vmatpush1.msra.mxu0 %v129
    %1112 = vmatprep.subr.mxu0 %v126
    %1113 = vmatpush1.msra.mxu0 %v125
    %1114 = vmatprep.subr.mxu0 %v122
    %1115 = vmatpush1.msra.mxu0 %v121
    %1116 = vmatprep.subr.mxu0 %v118
    %1117 = vmatpush1.msra.mxu0 %v117
    %1118 = vmatprep.subr.mxu0 %v114
    %1119 = vmatpush1.msra.mxu0 %v113
    %1120 = vmatprep.subr.mxu0 %v110
    %1121 = vmatpush1.msra.mxu0 %v109
    %1122 = vmatprep.subr.mxu0 %v106
    %1123 = vmatpush1.msra.mxu0 %v105
    %1124 = vmatprep.subr.mxu0 %v102
    %1125 = vmatpush1.msra.mxu0 %v101
    %1126 = vmatprep.subr.mxu0 0.0
    %1127 = vmatpush2.msra.mxu0 0.0
    %1128 = vmatprep.subr.mxu0 0.0
    %1129 = vmatpush2.msra.mxu0 0.0
    %1130 = vmatprep.subr.mxu0 0.0
    %1131 = vmatpush2.msra.mxu0 0.0
    %1132 = vmatprep.subr.mxu0 0.0
    %1133 = vmatpush2.msra.mxu0 0.0
    %1134 = vmatprep.subr.mxu0 0.0
    %1135 = vmatpush2.msra.mxu0 0.0
    %1136 = vmatprep.subr.mxu0 0.0
    %1137 = vmatpush2.msra.mxu0 0.0
    %1138 = vmatprep.subr.mxu0 0.0
    %1139 = vmatpush2.msra.mxu0 0.0
    %1140 = vmatprep.subr.mxu0 0.0
    %1141 = vmatpush2.msra.mxu0 0.0
    %1142 = vmatprep.subr.mxu0 0.0
    %1143 = vmatpush2.msra.mxu0 0.0
    %1144 = vmatprep.subr.mxu0 0.0
    %1145 = vmatpush2.msra.mxu0 0.0
    %1146 = vmatprep.subr.mxu0 0.0
    %1147 = vmatpush2.msra.mxu0 0.0
    %1148 = vmatprep.subr.mxu0 0.0
    %1149 = vmatpush2.msra.mxu0 0.0
    %1150 = vmatprep.subr.mxu0 0.0
    %1151 = vmatpush2.msra.mxu0 0.0
    %1152 = vmatprep.subr.mxu0 0.0
    %1153 = vmatpush2.msra.mxu0 0.0
    %1154 = vmatprep.subr.mxu0 0.0
    %1155 = vmatpush2.msra.mxu0 0.0
    %1156 = vmatprep.subr.mxu0 0.0
    %1157 = vmatpush2.msra.mxu0 0.0
    %1158 = vmatprep.mubr.f32.mxu0 0.0
    %1159 = vmatmul.mubr.f32.gmra.mxu0 %v1093
    %v1160 = vpop.f32.mrf.mxu0
    %v1161 = vadd.f32 0.0, %v1160
    %v1162 = vpop.f32.mrf.mxu0
    %v1163 = vadd.f32 0.0, %v1162
    %1164 = vdwg.mxu0
    %1165 = vmatprep.subr.mxu0 %v164
    %1166 = vmatpush1.msra.mxu0 %v163
    %1167 = vmatprep.subr.mxu0 %v160
    %1168 = vmatpush1.msra.mxu0 %v159
    %1169 = vmatprep.subr.mxu0 %v156
    %1170 = vmatpush1.msra.mxu0 %v155
    %1171 = vmatprep.subr.mxu0 %v152
    %1172 = vmatpush1.msra.mxu0 %v151
    %1173 = vmatprep.subr.mxu0 %v148
    %1174 = vmatpush1.msra.mxu0 %v147
    %1175 = vmatprep.subr.mxu0 %v144
    %1176 = vmatpush1.msra.mxu0 %v143
    %1177 = vmatprep.subr.mxu0 %v140
    %1178 = vmatpush1.msra.mxu0 %v139
    %1179 = vmatprep.subr.mxu0 %v136
    %1180 = vmatpush1.msra.mxu0 %v135
    %1181 = vmatprep.subr.mxu0 %v132
    %1182 = vmatpush1.msra.mxu0 %v131
    %1183 = vmatprep.subr.mxu0 %v128
    %1184 = vmatpush1.msra.mxu0 %v127
    %1185 = vmatprep.subr.mxu0 %v124
    %1186 = vmatpush1.msra.mxu0 %v123
    %1187 = vmatprep.subr.mxu0 %v120
    %1188 = vmatpush1.msra.mxu0 %v119
    %1189 = vmatprep.subr.mxu0 %v116
    %1190 = vmatpush1.msra.mxu0 %v115
    %1191 = vmatprep.subr.mxu0 %v112
    %1192 = vmatpush1.msra.mxu0 %v111
    %1193 = vmatprep.subr.mxu0 %v108
    %1194 = vmatpush1.msra.mxu0 %v107
    %1195 = vmatprep.subr.mxu0 %v104
    %1196 = vmatpush1.msra.mxu0 %v103
    %1197 = vmatprep.subr.mxu0 0.0
    %1198 = vmatpush2.msra.mxu0 0.0
    %1199 = vmatprep.subr.mxu0 0.0
    %1200 = vmatpush2.msra.mxu0 0.0
    %1201 = vmatprep.subr.mxu0 0.0
    %1202 = vmatpush2.msra.mxu0 0.0
    %1203 = vmatprep.subr.mxu0 0.0
    %1204 = vmatpush2.msra.mxu0 0.0
    %1205 = vmatprep.subr.mxu0 0.0
    %1206 = vmatpush2.msra.mxu0 0.0
    %1207 = vmatprep.subr.mxu0 0.0
    %1208 = vmatpush2.msra.mxu0 0.0
    %1209 = vmatprep.subr.mxu0 0.0
    %1210 = vmatpush2.msra.mxu0 0.0
    %1211 = vmatprep.subr.mxu0 0.0
    %1212 = vmatpush2.msra.mxu0 0.0
    %1213 = vmatprep.subr.mxu0 0.0
    %1214 = vmatpush2.msra.mxu0 0.0
    %1215 = vmatprep.subr.mxu0 0.0
    %1216 = vmatpush2.msra.mxu0 0.0
    %1217 = vmatprep.subr.mxu0 0.0
    %1218 = vmatpush2.msra.mxu0 0.0
    %1219 = vmatprep.subr.mxu0 0.0
    %1220 = vmatpush2.msra.mxu0 0.0
    %1221 = vmatprep.subr.mxu0 0.0
    %1222 = vmatpush2.msra.mxu0 0.0
    %1223 = vmatprep.subr.mxu0 0.0
    %1224 = vmatpush2.msra.mxu0 0.0
    %1225 = vmatprep.subr.mxu0 0.0
    %1226 = vmatpush2.msra.mxu0 0.0
    %1227 = vmatprep.subr.mxu0 0.0
    %1228 = vmatpush2.msra.mxu0 0.0
    %1229 = vmatprep.mubr.f32.mxu0 0.0
    %1230 = vmatmul.mubr.f32.gmra.mxu0 %v1093
    %v1231 = vpop.f32.mrf.mxu0
    %v1232 = vadd.f32 0.0, %v1231
    %v1233 = vpop.f32.mrf.mxu0
    %v1234 = vadd.f32 0.0, %v1233
    %1235 = vdwg.mxu0
    %v1240 = vrot.slane %v1161, 7
    %v1241 = vrot.slane %v1163, 7
    %v1242 = vrot.slane %v1232, 7
    %v1243 = vrot.slane %v1234, 7
    %v1248 = vadd.f32 %v97, %v1240
    %v1249 = vadd.f32 %v98, %v1241
    %v1250 = vadd.f32 %v99, %v1242
    %v1251 = vadd.f32 %v100, %v1243
    %v1252 = vtanh.pop %v1248
    %v1253 = vtanh.pop %v1249
    %v1254 = vtanh.pop %v1250
    %v1255 = vtanh.pop %v1251
    %v1256 = vmul.f32 %v1252, %v331
    %v1257 = vmul.f32 %v1253, %v335
    %v1258 = vmul.f32 %v1254, %v339
    %v1259 = vmul.f32 %v1255, %v343
    %v1260 = vadd.f32 %v1256, %v356
    %v1261 = vadd.f32 %v1257, %v360
    %v1262 = vadd.f32 %v1258, %v364
    %v1263 = vadd.f32 %v1259, %v368
    %v1265 = vrot.slane %v1091, 7
    %v1267 = vmul.f32 %v1261, %v1265
    %v1268 = vmul.f32 %v1260, %v1262
    %v1269 = vadd.f32 %v1267, %v1268
    %v1270 = vtanh.pop %v1269
    %v1271 = vmul.f32 %v1263, %v1270
    %v1273 = vrot.slane %v1271, 1
    %1275 = vmatprep.subr.mxu0 %v162
    %1276 = vmatpush1.msra.mxu0 %v161
    %1277 = vmatprep.subr.mxu0 %v158
    %1278 = vmatpush1.msra.mxu0 %v157
    %1279 = vmatprep.subr.mxu0 %v154
    %1280 = vmatpush1.msra.mxu0 %v153
    %1281 = vmatprep.subr.mxu0 %v150
    %1282 = vmatpush1.msra.mxu0 %v149
    %1283 = vmatprep.subr.mxu0 %v146
    %1284 = vmatpush1.msra.mxu0 %v145
    %1285 = vmatprep.subr.mxu0 %v142
    %1286 = vmatpush1.msra.mxu0 %v141
    %1287 = vmatprep.subr.mxu0 %v138
    %1288 = vmatpush1.msra.mxu0 %v137
    %1289 = vmatprep.subr.mxu0 %v134
    %1290 = vmatpush1.msra.mxu0 %v133
    %1291 = vmatprep.subr.mxu0 %v130
    %1292 = vmatpush1.msra.mxu0 %v129
    %1293 = vmatprep.subr.mxu0 %v126
    %1294 = vmatpush1.msra.mxu0 %v125
    %1295 = vmatprep.subr.mxu0 %v122
    %1296 = vmatpush1.msra.mxu0 %v121
    %1297 = vmatprep.subr.mxu0 %v118
    %1298 = vmatpush1.msra.mxu0 %v117
    %1299 = vmatprep.subr.mxu0 %v114
    %1300 = vmatpush1.msra.mxu0 %v113
    %1301 = vmatprep.subr.mxu0 %v110
    %1302 = vmatpush1.msra.mxu0 %v109
    %1303 = vmatprep.subr.mxu0 %v106
    %1304 = vmatpush1.msra.mxu0 %v105
    %1305 = vmatprep.subr.mxu0 %v102
    %1306 = vmatpush1.msra.mxu0 %v101
    %1307 = vmatprep.subr.mxu0 0.0
    %1308 = vmatpush2.msra.mxu0 0.0
    %1309 = vmatprep.subr.mxu0 0.0
    %1310 = vmatpush2.msra.mxu0 0.0
    %1311 = vmatprep.subr.mxu0 0.0
    %1312 = vmatpush2.msra.mxu0 0.0
    %1313 = vmatprep.subr.mxu0 0.0
    %1314 = vmatpush2.msra.mxu0 0.0
    %1315 = vmatprep.subr.mxu0 0.0
    %1316 = vmatpush2.msra.mxu0 0.0
    %1317 = vmatprep.subr.mxu0 0.0
    %1318 = vmatpush2.msra.mxu0 0.0
    %1319 = vmatprep.subr.mxu0 0.0
    %1320 = vmatpush2.msra.mxu0 0.0
    %1321 = vmatprep.subr.mxu0 0.0
    %1322 = vmatpush2.msra.mxu0 0.0
    %1323 = vmatprep.subr.mxu0 0.0
    %1324 = vmatpush2.msra.mxu0 0.0
    %1325 = vmatprep.subr.mxu0 0.0
    %1326 = vmatpush2.msra.mxu0 0.0
    %1327 = vmatprep.subr.mxu0 0.0
    %1328 = vmatpush2.msra.mxu0 0.0
    %1329 = vmatprep.subr.mxu0 0.0
    %1330 = vmatpush2.msra.mxu0 0.0
    %1331 = vmatprep.subr.mxu0 0.0
    %1332 = vmatpush2.msra.mxu0 0.0
    %1333 = vmatprep.subr.mxu0 0.0
    %1334 = vmatpush2.msra.mxu0 0.0
    %1335 = vmatprep.subr.mxu0 0.0
    %1336 = vmatpush2.msra.mxu0 0.0
    %1337 = vmatprep.subr.mxu0 0.0
    %1338 = vmatpush2.msra.mxu0 0.0
    %1339 = vmatprep.mubr.f32.mxu0 0.0
    %1340 = vmatmul.mubr.f32.gmra.mxu0 %v1273
    %v1341 = vpop.f32.mrf.mxu0
    %v1342 = vadd.f32 0.0, %v1341
    %v1343 = vpop.f32.mrf.mxu0
    %v1344 = vadd.f32 0.0, %v1343
    %1345 = vdwg.mxu0
    %1346 = vmatprep.subr.mxu0 %v164
    %1347 = vmatpush1.msra.mxu0 %v163
    %1348 = vmatprep.subr.mxu0 %v160
    %1349 = vmatpush1.msra.mxu0 %v159
    %1350 = vmatprep.subr.mxu0 %v156
    %1351 = vmatpush1.msra.mxu0 %v155
    %1352 = vmatprep.subr.mxu0 %v152
    %1353 = vmatpush1.msra.mxu0 %v151
    %1354 = vmatprep.subr.mxu0 %v148
    %1355 = vmatpush1.msra.mxu0 %v147
    %1356 = vmatprep.subr.mxu0 %v144
    %1357 = vmatpush1.msra.mxu0 %v143
    %1358 = vmatprep.subr.mxu0 %v140
    %1359 = vmatpush1.msra.mxu0 %v139
    %1360 = vmatprep.subr.mxu0 %v136
    %1361 = vmatpush1.msra.mxu0 %v135
    %1362 = vmatprep.subr.mxu0 %v132
    %1363 = vmatpush1.msra.mxu0 %v131
    %1364 = vmatprep.subr.mxu0 %v128
    %1365 = vmatpush1.msra.mxu0 %v127
    %1366 = vmatprep.subr.mxu0 %v124
    %1367 = vmatpush1.msra.mxu0 %v123
    %1368 = vmatprep.subr.mxu0 %v120
    %1369 = vmatpush1.msra.mxu0 %v119
    %1370 = vmatprep.subr.mxu0 %v116
    %1371 = vmatpush1.msra.mxu0 %v115
    %1372 = vmatprep.subr.mxu0 %v112
    %1373 = vmatpush1.msra.mxu0 %v111
    %1374 = vmatprep.subr.mxu0 %v108
    %1375 = vmatpush1.msra.mxu0 %v107
    %1376 = vmatprep.subr.mxu0 %v104
    %1377 = vmatpush1.msra.mxu0 %v103
    %1378 = vmatprep.subr.mxu0 0.0
    %1379 = vmatpush2.msra.mxu0 0.0
    %1380 = vmatprep.subr.mxu0 0.0
    %1381 = vmatpush2.msra.mxu0 0.0
    %1382 = vmatprep.subr.mxu0 0.0
    %1383 = vmatpush2.msra.mxu0 0.0
    %1384 = vmatprep.subr.mxu0 0.0
    %1385 = vmatpush2.msra.mxu0 0.0
    %1386 = vmatprep.subr.mxu0 0.0
    %1387 = vmatpush2.msra.mxu0 0.0
    %1388 = vmatprep.subr.mxu0 0.0
    %1389 = vmatpush2.msra.mxu0 0.0
    %1390 = vmatprep.subr.mxu0 0.0
    %1391 = vmatpush2.msra.mxu0 0.0
    %1392 = vmatprep.subr.mxu0 0.0
    %1393 = vmatpush2.msra.mxu0 0.0
    %1394 = vmatprep.subr.mxu0 0.0
    %1395 = vmatpush2.msra.mxu0 0.0
    %1396 = vmatprep.subr.mxu0 0.0
    %1397 = vmatpush2.msra.mxu0 0.0
    %1398 = vmatprep.subr.mxu0 0.0
    %1399 = vmatpush2.msra.mxu0 0.0
    %1400 = vmatprep.subr.mxu0 0.0
    %1401 = vmatpush2.msra.mxu0 0.0
    %1402 = vmatprep.subr.mxu0 0.0
    %1403 = vmatpush2.msra.mxu0 0.0
    %1404 = vmatprep.subr.mxu0 0.0
    %1405 = vmatpush2.msra.mxu0 0.0
    %1406 = vmatprep.subr.mxu0 0.0
    %1407 = vmatpush2.msra.mxu0 0.0
    %1408 = vmatprep.subr.mxu0 0.0
    %1409 = vmatpush2.msra.mxu0 0.0
    %1410 = vmatprep.mubr.f32.mxu0 0.0
    %1411 = vmatmul.mubr.f32.gmra.mxu0 %v1273
    %v1412 = vpop.f32.mrf.mxu0
    %v1413 = vadd.f32 0.0, %v1412
    %v1414 = vpop.f32.mrf.mxu0
    %v1415 = vadd.f32 0.0, %v1414
    %1416 = vdwg.mxu0
    %v1421 = vrot.slane %v1342, 6
    %v1422 = vrot.slane %v1344, 6
    %v1423 = vrot.slane %v1413, 6
    %v1424 = vrot.slane %v1415, 6
    %v1429 = vadd.f32 %v97, %v1421
    %v1430 = vadd.f32 %v98, %v1422
    %v1431 = vadd.f32 %v99, %v1423
    %v1432 = vadd.f32 %v100, %v1424
    %v1433 = vtanh.pop %v1429
    %v1434 = vtanh.pop %v1430
    %v1435 = vtanh.pop %v1431
    %v1436 = vtanh.pop %v1432
    %v1437 = vmul.f32 %v1433, %v331
    %v1438 = vmul.f32 %v1434, %v335
    %v1439 = vmul.f32 %v1435, %v339
    %v1440 = vmul.f32 %v1436, %v343
    %v1441 = vadd.f32 %v1437, %v356
    %v1442 = vadd.f32 %v1438, %v360
    %v1443 = vadd.f32 %v1439, %v364
    %v1444 = vadd.f32 %v1440, %v368
    %v1446 = vrot.slane %v1269, 7
    %v1448 = vmul.f32 %v1442, %v1446
    %v1449 = vmul.f32 %v1441, %v1443
    %v1450 = vadd.f32 %v1448, %v1449
    %v1451 = vtanh.pop %v1450
    %v1452 = vmul.f32 %v1444, %v1451
    %v1454 = vrot.slane %v1452, 2
    %1456 = vmatprep.subr.mxu0 %v162
    %1457 = vmatpush1.msra.mxu0 %v161
    %1458 = vmatprep.subr.mxu0 %v158
    %1459 = vmatpush1.msra.mxu0 %v157
    %1460 = vmatprep.subr.mxu0 %v154
    %1461 = vmatpush1.msra.mxu0 %v153
    %1462 = vmatprep.subr.mxu0 %v150
    %1463 = vmatpush1.msra.mxu0 %v149
    %1464 = vmatprep.subr.mxu0 %v146
    %1465 = vmatpush1.msra.mxu0 %v145
    %1466 = vmatprep.subr.mxu0 %v142
    %1467 = vmatpush1.msra.mxu0 %v141
    %1468 = vmatprep.subr.mxu0 %v138
    %1469 = vmatpush1.msra.mxu0 %v137
    %1470 = vmatprep.subr.mxu0 %v134
    %1471 = vmatpush1.msra.mxu0 %v133
    %1472 = vmatprep.subr.mxu0 %v130
    %1473 = vmatpush1.msra.mxu0 %v129
    %1474 = vmatprep.subr.mxu0 %v126
    %1475 = vmatpush1.msra.mxu0 %v125
    %1476 = vmatprep.subr.mxu0 %v122
    %1477 = vmatpush1.msra.mxu0 %v121
    %1478 = vmatprep.subr.mxu0 %v118
    %1479 = vmatpush1.msra.mxu0 %v117
    %1480 = vmatprep.subr.mxu0 %v114
    %1481 = vmatpush1.msra.mxu0 %v113
    %1482 = vmatprep.subr.mxu0 %v110
    %1483 = vmatpush1.msra.mxu0 %v109
    %1484 = vmatprep.subr.mxu0 %v106
    %1485 = vmatpush1.msra.mxu0 %v105
    %1486 = vmatprep.subr.mxu0 %v102
    %1487 = vmatpush1.msra.mxu0 %v101
    %1488 = vmatprep.subr.mxu0 0.0
    %1489 = vmatpush2.msra.mxu0 0.0
    %1490 = vmatprep.subr.mxu0 0.0
    %1491 = vmatpush2.msra.mxu0 0.0
    %1492 = vmatprep.subr.mxu0 0.0
    %1493 = vmatpush2.msra.mxu0 0.0
    %1494 = vmatprep.subr.mxu0 0.0
    %1495 = vmatpush2.msra.mxu0 0.0
    %1496 = vmatprep.subr.mxu0 0.0
    %1497 = vmatpush2.msra.mxu0 0.0
    %1498 = vmatprep.subr.mxu0 0.0
    %1499 = vmatpush2.msra.mxu0 0.0
    %1500 = vmatprep.subr.mxu0 0.0
    %1501 = vmatpush2.msra.mxu0 0.0
    %1502 = vmatprep.subr.mxu0 0.0
    %1503 = vmatpush2.msra.mxu0 0.0
    %1504 = vmatprep.subr.mxu0 0.0
    %1505 = vmatpush2.msra.mxu0 0.0
    %1506 = vmatprep.subr.mxu0 0.0
    %1507 = vmatpush2.msra.mxu0 0.0
    %1508 = vmatprep.subr.mxu0 0.0
    %1509 = vmatpush2.msra.mxu0 0.0
    %1510 = vmatprep.subr.mxu0 0.0
    %1511 = vmatpush2.msra.mxu0 0.0
    %1512 = vmatprep.subr.mxu0 0.0
    %1513 = vmatpush2.msra.mxu0 0.0
    %1514 = vmatprep.subr.mxu0 0.0
    %1515 = vmatpush2.msra.mxu0 0.0
    %1516 = vmatprep.subr.mxu0 0.0
    %1517 = vmatpush2.msra.mxu0 0.0
    %1518 = vmatprep.subr.mxu0 0.0
    %1519 = vmatpush2.msra.mxu0 0.0
    %1520 = vmatprep.mubr.f32.mxu0 0.0
    %1521 = vmatmul.mubr.f32.gmra.mxu0 %v1454
    %v1522 = vpop.f32.mrf.mxu0
    %v1523 = vadd.f32 0.0, %v1522
    %v1524 = vpop.f32.mrf.mxu0
    %v1525 = vadd.f32 0.0, %v1524
    %1526 = vdwg.mxu0
    %1527 = vmatprep.subr.mxu0 %v164
    %1528 = vmatpush1.msra.mxu0 %v163
    %1529 = vmatprep.subr.mxu0 %v160
    %1530 = vmatpush1.msra.mxu0 %v159
    %1531 = vmatprep.subr.mxu0 %v156
    %1532 = vmatpush1.msra.mxu0 %v155
    %1533 = vmatprep.subr.mxu0 %v152
    %1534 = vmatpush1.msra.mxu0 %v151
    %1535 = vmatprep.subr.mxu0 %v148
    %1536 = vmatpush1.msra.mxu0 %v147
    %1537 = vmatprep.subr.mxu0 %v144
    %1538 = vmatpush1.msra.mxu0 %v143
    %1539 = vmatprep.subr.mxu0 %v140
    %1540 = vmatpush1.msra.mxu0 %v139
    %1541 = vmatprep.subr.mxu0 %v136
    %1542 = vmatpush1.msra.mxu0 %v135
    %1543 = vmatprep.subr.mxu0 %v132
    %1544 = vmatpush1.msra.mxu0 %v131
    %1545 = vmatprep.subr.mxu0 %v128
    %1546 = vmatpush1.msra.mxu0 %v127
    %1547 = vmatprep.subr.mxu0 %v124
    %1548 = vmatpush1.msra.mxu0 %v123
    %1549 = vmatprep.subr.mxu0 %v120
    %1550 = vmatpush1.msra.mxu0 %v119
    %1551 = vmatprep.subr.mxu0 %v116
    %1552 = vmatpush1.msra.mxu0 %v115
    %1553 = vmatprep.subr.mxu0 %v112
    %1554 = vmatpush1.msra.mxu0 %v111
    %1555 = vmatprep.subr.mxu0 %v108
    %1556 = vmatpush1.msra.mxu0 %v107
    %1557 = vmatprep.subr.mxu0 %v104
    %1558 = vmatpush1.msra.mxu0 %v103
    %1559 = vmatprep.subr.mxu0 0.0
    %1560 = vmatpush2.msra.mxu0 0.0
    %1561 = vmatprep.subr.mxu0 0.0
    %1562 = vmatpush2.msra.mxu0 0.0
    %1563 = vmatprep.subr.mxu0 0.0
    %1564 = vmatpush2.msra.mxu0 0.0
    %1565 = vmatprep.subr.mxu0 0.0
    %1566 = vmatpush2.msra.mxu0 0.0
    %1567 = vmatprep.subr.mxu0 0.0
    %1568 = vmatpush2.msra.mxu0 0.0
    %1569 = vmatprep.subr.mxu0 0.0
    %1570 = vmatpush2.msra.mxu0 0.0
    %1571 = vmatprep.subr.mxu0 0.0
    %1572 = vmatpush2.msra.mxu0 0.0
    %1573 = vmatprep.subr.mxu0 0.0
    %1574 = vmatpush2.msra.mxu0 0.0
    %1575 = vmatprep.subr.mxu0 0.0
    %1576 = vmatpush2.msra.mxu0 0.0
    %1577 = vmatprep.subr.mxu0 0.0
    %1578 = vmatpush2.msra.mxu0 0.0
    %1579 = vmatprep.subr.mxu0 0.0
    %1580 = vmatpush2.msra.mxu0 0.0
    %1581 = vmatprep.subr.mxu0 0.0
    %1582 = vmatpush2.msra.mxu0 0.0
    %1583 = vmatprep.subr.mxu0 0.0
    %1584 = vmatpush2.msra.mxu0 0.0
    %1585 = vmatprep.subr.mxu0 0.0
    %1586 = vmatpush2.msra.mxu0 0.0
    %1587 = vmatprep.subr.mxu0 0.0
    %1588 = vmatpush2.msra.mxu0 0.0
    %1589 = vmatprep.subr.mxu0 0.0
    %1590 = vmatpush2.msra.mxu0 0.0
    %1591 = vmatprep.mubr.f32.mxu0 0.0
    %1592 = vmatmul.mubr.f32.gmra.mxu0 %v1454
    %v1593 = vpop.f32.mrf.mxu0
    %v1594 = vadd.f32 0.0, %v1593
    %v1595 = vpop.f32.mrf.mxu0
    %v1596 = vadd.f32 0.0, %v1595
    %1597 = vdwg.mxu0
    %v1602 = vrot.slane %v1523, 5
    %v1603 = vrot.slane %v1525, 5
    %v1604 = vrot.slane %v1594, 5
    %v1605 = vrot.slane %v1596, 5
    %v1610 = vadd.f32 %v97, %v1602
    %v1611 = vadd.f32 %v98, %v1603
    %v1612 = vadd.f32 %v99, %v1604
    %v1613 = vadd.f32 %v100, %v1605
    %v1614 = vtanh.pop %v1610
    %v1615 = vtanh.pop %v1611
    %v1616 = vtanh.pop %v1612
    %v1617 = vtanh.pop %v1613
    %v1618 = vmul.f32 %v1614, %v331
    %v1619 = vmul.f32 %v1615, %v335
    %v1620 = vmul.f32 %v1616, %v339
    %v1621 = vmul.f32 %v1617, %v343
    %v1622 = vadd.f32 %v1618, %v356
    %v1623 = vadd.f32 %v1619, %v360
    %v1624 = vadd.f32 %v1620, %v364
    %v1625 = vadd.f32 %v1621, %v368
    %v1627 = vrot.slane %v1450, 7
    %v1629 = vmul.f32 %v1623, %v1627
    %v1630 = vmul.f32 %v1622, %v1624
    %v1631 = vadd.f32 %v1629, %v1630
    %v1632 = vtanh.pop %v1631
    %v1633 = vmul.f32 %v1625, %v1632
    %v1634 = vld [vmem:[#allocation2 + $0x20] sm:$0xff]
    %v1635 = vld [vmem:[#allocation2 + $0x48] sm:$0xff]
    %v1636 = vld [vmem:[#allocation2 + $0x70] sm:$0xff]
    %v1637 = vld [vmem:[#allocation2 + $0x98] sm:$0xff]
    %v1638 = vld [vmem:[#allocation2 + $0xc0] sm:$0xff]
    %v1639 = vld [vmem:[#allocation2 + $0xe8] sm:$0xff]
    %v1640 = vld [vmem:[#allocation2 + $0x110] sm:$0xff]
    %v1641 = vld [vmem:[#allocation2 + $0x138] sm:$0xff]
    %v1642 = vld [vmem:[#allocation2 + $0x160] sm:$0xff]
    %v1643 = vld [vmem:[#allocation2 + $0x188] sm:$0xff]
    %v1644 = vld [vmem:[#allocation2 + $0x1b0] sm:$0xff]
    %v1645 = vld [vmem:[#allocation2 + $0x1d8] sm:$0xff]
    %v1646 = vld [vmem:[#allocation2 + $0x200] sm:$0xff]
    %v1647 = vld [vmem:[#allocation2 + $0x228] sm:$0xff]
    %v1648 = vld [vmem:[#allocation2 + $0x250] sm:$0xff]
    %v1649 = vld [vmem:[#allocation2 + $0x278] sm:$0xff]
    %v1650 = vld [vmem:[#allocation2 + $0x2a1] ss:$0 sm:$0xff]
    %v1652 = vrot.slane %v1633, 3
    %1654 = vmatprep.subr.mxu0 0.0
    %1655 = vmatpush1.msra.mxu0 %v1649
    %1656 = vmatprep.subr.mxu0 0.0
    %1657 = vmatpush1.msra.mxu0 %v1648
    %1658 = vmatprep.subr.mxu0 0.0
    %1659 = vmatpush1.msra.mxu0 %v1647
    %1660 = vmatprep.subr.mxu0 0.0
    %1661 = vmatpush1.msra.mxu0 %v1646
    %1662 = vmatprep.subr.mxu0 0.0
    %1663 = vmatpush1.msra.mxu0 %v1645
    %1664 = vmatprep.subr.mxu0 0.0
    %1665 = vmatpush1.msra.mxu0 %v1644
    %1666 = vmatprep.subr.mxu0 0.0
    %1667 = vmatpush1.msra.mxu0 %v1643
    %1668 = vmatprep.subr.mxu0 0.0
    %1669 = vmatpush1.msra.mxu0 %v1642
    %1670 = vmatprep.subr.mxu0 0.0
    %1671 = vmatpush1.msra.mxu0 %v1641
    %1672 = vmatprep.subr.mxu0 0.0
    %1673 = vmatpush1.msra.mxu0 %v1640
    %1674 = vmatprep.subr.mxu0 0.0
    %1675 = vmatpush1.msra.mxu0 %v1639
    %1676 = vmatprep.subr.mxu0 0.0
    %1677 = vmatpush1.msra.mxu0 %v1638
    %1678 = vmatprep.subr.mxu0 0.0
    %1679 = vmatpush1.msra.mxu0 %v1637
    %1680 = vmatprep.subr.mxu0 0.0
    %1681 = vmatpush1.msra.mxu0 %v1636
    %1682 = vmatprep.subr.mxu0 0.0
    %1683 = vmatpush1.msra.mxu0 %v1635
    %1684 = vmatprep.subr.mxu0 0.0
    %1685 = vmatpush1.msra.mxu0 %v1634
    %1686 = vmatprep.subr.mxu0 0.0
    %1687 = vmatpush2.msra.mxu0 0.0
    %1688 = vmatprep.subr.mxu0 0.0
    %1689 = vmatpush2.msra.mxu0 0.0
    %1690 = vmatprep.subr.mxu0 0.0
    %1691 = vmatpush2.msra.mxu0 0.0
    %1692 = vmatprep.subr.mxu0 0.0
    %1693 = vmatpush2.msra.mxu0 0.0
    %1694 = vmatprep.subr.mxu0 0.0
    %1695 = vmatpush2.msra.mxu0 0.0
    %1696 = vmatprep.subr.mxu0 0.0
    %1697 = vmatpush2.msra.mxu0 0.0
    %1698 = vmatprep.subr.mxu0 0.0
    %1699 = vmatpush2.msra.mxu0 0.0
    %1700 = vmatprep.subr.mxu0 0.0
    %1701 = vmatpush2.msra.mxu0 0.0
    %1702 = vmatprep.subr.mxu0 0.0
    %1703 = vmatpush2.msra.mxu0 0.0
    %1704 = vmatprep.subr.mxu0 0.0
    %1705 = vmatpush2.msra.mxu0 0.0
    %1706 = vmatprep.subr.mxu0 0.0
    %1707 = vmatpush2.msra.mxu0 0.0
    %1708 = vmatprep.subr.mxu0 0.0
    %1709 = vmatpush2.msra.mxu0 0.0
    %1710 = vmatprep.subr.mxu0 0.0
    %1711 = vmatpush2.msra.mxu0 0.0
    %1712 = vmatprep.subr.mxu0 0.0
    %1713 = vmatpush2.msra.mxu0 0.0
    %1714 = vmatprep.subr.mxu0 0.0
    %1715 = vmatpush2.msra.mxu0 0.0
    %1716 = vmatprep.subr.mxu0 0.0
    %1717 = vmatpush2.msra.mxu0 0.0
    %1718 = vmatprep.mubr.f32.mxu0 0.0
    %1719 = vmatmul.mubr.f32.gmra.mxu0 %v1652
    %v1720 = vpop.f32.mrf.mxu0
    %v1721 = vadd.f32 %v1650, %v1720
    %v1722 = vpop.f32.mrf.mxu0
    %1723 = vdwg.mxu0
    %1724 = vst [vmem:[#allocation5] sm:$0x1] %v1721
    // Predicated region
    $region10: #{tpu_custom_call.1} parent=1 // pred_check
      _
    $region11: #{tpu_custom_call.1} parent=1 // pred_check_branch
      %1726 = sbr.rel (0) target = $region13
    $region12: #{tpu_custom_call.1} parent=1 // pred_region
      %s1728 = ssub.s32 16, 16
      %1729 = vsyncadd [#allocation4], %s1728
      %s1731 = sshll.u32 [#allocation5], 4
      %s1732 = int_to_ptr.vmem [resolvable:$true] %s1731
      %1734 = dma.vmem_to_hbm [thread:$0]  %s1732, 16, %s1, [#allocation4]
    $region13: #{tpu_custom_call.1} parent=1 // pred_fallthru
      _
    // Predicated region
    $region14: #{tpu_custom_call.1} parent=1 // pred_check
      _
    $region15: #{tpu_custom_call.1} parent=1 // pred_check_branch
      %1736 = sbr.rel (0) target = $region17
    $region16: #{tpu_custom_call.1} parent=1 // pred_region
      %1737 = dma.done [#allocation4], 16
    $region17: #{tpu_custom_call.1} parent=1 // pred_fallthru
      _
    %1738 = vsyncpa [#allocation3], 1
    %1739 = vsyncpa [#allocation4], 1

</llo_original>
